<compile_context>
chip_gen: v7x
topology: tpu7x:2x2x1
jax: 0.10.0
libtpu: 0.0.40
codegen_flags: <defaults>
</compile_context>

<pallas_src>
import math

import jax
import jax.numpy as jnp
from jax.experimental import pallas as pl
from jax.experimental.pallas import tpu as pltpu

# ---- small toy config (consistent with the module's __init__/forward) ----
VOCAB = 256        # vocab_size
D = 128            # embedding_dim
T = 16             # seq len == max_seq_len
B = 2              # batch
BT = B * T         # folded batch*seq rows
H = 4              # num_heads (== num_query_groups -> plain MHA)
HD = D // H        # head_dim = 32 (rotary_percentage = 1.0 -> full head rotated)
HD2 = HD // 2      # 16
FF = 256           # gated feed-forward intermediate size
EPS = 1e-6         # RMSNorm eps
ROPE_BASE = 10000.0


def _toy_kernel(
    x_ref, cos_ref, sina_ref, sinb_ref, mask_ref,
    g_pre_ref, wqkv_ref, wo_ref, g_post_ref, g_final_ref,
    w13_hbm, w2_hbm, wlm_hbm,
    out_ref,
    w13_buf, w2_buf, wlm_buf, dma_sems,
):
  """Whole model in one grid step; activations are a (B*T, D) slab."""
  # --- start the back-half weight DMAs so they overlap with attention ---
  cp13 = pltpu.make_async_copy(w13_hbm, w13_buf, dma_sems.at[0])
  cp2 = pltpu.make_async_copy(w2_hbm, w2_buf, dma_sems.at[1])
  cplm = pltpu.make_async_copy(wlm_hbm, wlm_buf, dma_sems.at[2])
  cp13.start()
  cp2.start()
  cplm.start()

  x = x_ref[...]                                     # (BT, D) f32 residual

  def rms_norm(t, g_ref):                            # f32 elementwise math
    var = jnp.mean(t * t, axis=-1, keepdims=True)
    return t * jax.lax.rsqrt(var + EPS) * g_ref[...]

  # ---------------- attention (pre-norm) ----------------
  xn = rms_norm(x, g_pre_ref).astype(jnp.bfloat16)
  # fused QKV: one (BT, D) @ (D, 3D) matmul; 1/sqrt(HD) is pre-folded into the
  # Q columns of wqkv on the host (RoPE is linear -> exact).
  qkv = jnp.dot(xn, wqkv_ref[...], preferred_element_type=jnp.float32)
  q = qkv[:, 0 * D:1 * D]                            # 128-lane-aligned slices
  k = qkv[:, 1 * D:2 * D]
  v = qkv[:, 2 * D:3 * D]

  # Hoisted full-width RoPE in (BT, D) row layout.  Host tables (T, D) are
  # broadcast over batch with one sublane concat; per 32-lane head block the
  # tables encode cos|cos, -sin|0, 0|sin so that
  #   out = x*cos_t + roll(x,+HD2)*sin_a + roll(x,-HD2)*sin_b
  # reproduces [x1*cos - x2*sin, x2*cos + x1*sin].
  cos_t = jnp.concatenate([cos_ref[...]] * B, axis=0)   # (BT, D)
  sin_a = jnp.concatenate([sina_ref[...]] * B, axis=0)
  sin_b = jnp.concatenate([sinb_ref[...]] * B, axis=0)

  def rope_full(t):                                  # (BT, D) f32
    a = pltpu.roll(t, shift=D - HD2, axis=1)
    bv = pltpu.roll(t, shift=HD2, axis=1)
    return t * cos_t + a * sin_a + bv * sin_b

  q = rope_full(q)
  k = rope_full(k)

  # (BT, D) -> (H, BT, HD) head-major layout using only well-supported
  # relayouts: 2D transpose, leading-dim split (pure tile regroup since
  # HD=32 is a sublane-tile multiple), then a batched minor-dim swap.
  def to_heads(t):                                   # t: (BT, D) f32
    t3 = t.T.reshape(H, HD, BT)                      # (H, HD, BT)
    return jnp.swapaxes(t3, 1, 2)                    # (H, BT, HD)

  q3 = to_heads(q).astype(jnp.bfloat16)
  k3 = to_heads(k).astype(jnp.bfloat16)
  v3 = to_heads(v).astype(jnp.bfloat16)

  # Batched scores for all heads at once.  The mask is block-diagonal over the
  # folded (B*T) axis (cross-batch entries are -inf), so one softmax over the
  # whole (H, BT, BT) slab gives exactly the per-batch causal attention.
  s = jnp.einsum('hqd,hkd->hqk', q3, k3, preferred_element_type=jnp.float32)
  s = s + mask_ref[...][None, :, :]                  # (H, BT, BT)
  m = jnp.max(s, axis=-1, keepdims=True)
  p = jnp.exp(s - m)                                 # f32 softmax math
  denom = jnp.sum(p, axis=-1, keepdims=True)
  p_bf = (p * pl.reciprocal(denom, approx=True)).astype(jnp.bfloat16)
  o3 = jnp.einsum('hqk,hkd->hqd', p_bf, v3, preferred_element_type=jnp.float32)

  # (H, BT, HD) -> (BT, D): inverse layout transform, fed straight into the
  # output projection (no VMEM scratch round-trip).
  y = jnp.swapaxes(o3, 1, 2).reshape(D, BT).T        # (BT, D) f32
  x = x + jnp.dot(y.astype(jnp.bfloat16), wo_ref[...],
                  preferred_element_type=jnp.float32)

  # ------------- gated SiLU feed-forward (post-attn norm) -------------
  xn2 = rms_norm(x, g_post_ref).astype(jnp.bfloat16)
  cp13.wait()                                        # W1|W3 DMA hidden by attn
  gu = jnp.dot(xn2, w13_buf[...], preferred_element_type=jnp.float32)
  gate = gu[:, :FF]
  up = gu[:, FF:]
  ffh = (jax.nn.silu(gate) * up).astype(jnp.bfloat16)
  cp2.wait()
  x = x + jnp.dot(ffh, w2_buf[...], preferred_element_type=jnp.float32)

  # ------------- final norm + weight-shared lm_head -------------
  xf = rms_norm(x, g_final_ref).astype(jnp.bfloat16)
  cplm.wait()
  out_ref[...] = jnp.dot(xf, wlm_buf[...], preferred_element_type=jnp.float32)


def toy_forward(x_emb_flat, cos_td, sin_a_td, sin_b_td, mask_bd, params):
  (g_pre, wqkv, wo, g_post, g_final, w13, w2, wlm) = params

  def full(shape):
    n = len(shape)
    return pl.BlockSpec(shape, lambda i, n=n: (0,) * n)

  any_spec = pl.BlockSpec(memory_space=pl.ANY)       # keep in HBM, manual DMA

  grid_spec = pltpu.PrefetchScalarGridSpec(
      num_scalar_prefetch=0,
      grid=(1,),   # single step: latency/DMA-bound toy, no pipeline overhead
      in_specs=[
          full((BT, D)),                                     # x_emb (B*T folded)
          full((T, D)), full((T, D)), full((T, D)),          # rope tables
          full((BT, BT)),                                    # block-diag causal mask
          full((1, D)),                                      # pre-attn gamma
          full((D, 3 * D)),                                  # fused Wqkv (q pre-scaled)
          full((D, D)),                                      # Wo
          full((1, D)),                                      # post-attn gamma
          full((1, D)),                                      # final gamma
          any_spec,                                          # W1|W3  (manual DMA)
          any_spec,                                          # W2     (manual DMA)
          any_spec,                                          # lm_head(manual DMA)
      ],
      out_specs=pl.BlockSpec((BT, VOCAB), lambda i: (0, 0)),
      scratch_shapes=[
          pltpu.VMEM((D, 2 * FF), jnp.bfloat16),             # W1|W3 landing buf
          pltpu.VMEM((FF, D), jnp.bfloat16),                 # W2 landing buf
          pltpu.VMEM((D, VOCAB), jnp.bfloat16),              # lm_head landing buf
          pltpu.SemaphoreType.DMA((3,)),
      ],
  )

  matmul_flops = 2 * BT * D * (3 * D + D + 2 * FF + VOCAB) + 2 * BT * FF * D
  attn_flops = 2 * H * (2 * BT * BT * HD)
  weight_bytes = 2 * (D * 3 * D + D * D + D * 2 * FF + FF * D + D * VOCAB)
  act_bytes = 4 * (BT * D + 3 * T * D + BT * BT + 3 * D + BT * VOCAB)
  cost = pl.CostEstimate(
      flops=matmul_flops + attn_flops,
      transcendentals=H * BT * BT + BT * FF + 3 * BT,
      bytes_accessed=weight_bytes + act_bytes,
  )

  return pl.pallas_call(
      _toy_kernel,
      out_shape=jax.ShapeDtypeStruct((BT, VOCAB), jnp.float32),
      grid_spec=grid_spec,
      compiler_params=pltpu.CompilerParams(dimension_semantics=("arbitrary",)),
      cost_estimate=cost,
  )(x_emb_flat, cos_td, sin_a_td, sin_b_td, mask_bd,
    g_pre, wqkv, wo, g_post, g_final, w13, w2, wlm)


def _reference_forward(x_emb, cos, sin, mask, wq, wk, wv, wo, w1, w3, w2, wlm):
  """Plain-JAX f32 reference mirroring the PyTorch module (RMSNorm gammas=1)."""
  def rms(v):
    return v * jax.lax.rsqrt(jnp.mean(v * v, -1, keepdims=True) + EPS)

  def rope(xh):                                      # (B, T, HD) rotate-half
    x1, x2 = xh[..., :HD2], xh[..., HD2:]
    return jnp.concatenate([x1 * cos - x2 * sin, x2 * cos + x1 * sin], -1)

  x = x_emb
  xn = rms(x)
  q, k, v = xn @ wq, xn @ wk, xn @ wv
  heads = []
  for h in range(H):
    lo = h * HD
    qh, kh = rope(q[..., lo:lo + HD]), rope(k[..., lo:lo + HD])
    vh = v[..., lo:lo + HD]
    s = jnp.einsum('btd,bsd->bts', qh, kh) / math.sqrt(HD) + mask[None]
    heads.append(jnp.einsum('bts,bsd->btd', jax.nn.softmax(s, -1), vh))
  x = x + jnp.concatenate(heads, -1) @ wo
  xn2 = rms(x)
  x = x + (jax.nn.silu(xn2 @ w1) * (xn2 @ w3)) @ w2
  return rms(x) @ wlm


if __name__ == "__main__":
  key = jax.random.PRNGKey(0)
  keys = jax.random.split(key, 10)

  # Shared tok_embedding / lm_head weight, (VOCAB, D) -- weight sharing.
  emb_table = jax.random.normal(keys[0], (VOCAB, D), jnp.float32) * 0.02

  def lin(k, shape):        # (in, out) layout: y = x @ W  (== torch's x @ W.T)
    return jax.random.normal(k, shape, jnp.float32) * 0.02

  wq = lin(keys[1], (D, D)); wk = lin(keys[2], (D, D)); wv = lin(keys[3], (D, D))
  wo = lin(keys[4], (D, D))
  w1 = lin(keys[5], (D, FF)); w3 = lin(keys[6], (D, FF)); w2 = lin(keys[7], (FF, D))
  g_pre = jnp.ones((1, D), jnp.float32)      # RMSNorm weights default to ones
  g_post = jnp.ones((1, D), jnp.float32)
  g_final = jnp.ones((1, D), jnp.float32)

  # bf16 MXU operands; fused QKV (with 1/sqrt(HD) folded into the q columns)
  # and fused gate|up packing.  lm_head shares the embedding table (transposed).
  scale = 1.0 / math.sqrt(HD)
  wqkv_bf = jnp.concatenate([wq * scale, wk, wv], axis=1).astype(jnp.bfloat16)
  w13_bf = jnp.concatenate([w1, w3], axis=1).astype(jnp.bfloat16)       # (D,2FF)
  wo_bf = wo.astype(jnp.bfloat16)
  w2_bf = w2.astype(jnp.bfloat16)
  wlm_bf = emb_table.T.astype(jnp.bfloat16)                             # (D,VOCAB)

  # Inputs matching the torch forward signature (idx, input_pos).
  idx = jax.random.randint(keys[8], (B, T), 0, VOCAB, dtype=jnp.int32)
  input_pos = jnp.arange(T, dtype=jnp.int32)

  # ---- plain-JAX glue: embedding gather, rope cache, causal mask cache ----
  # TODO(synk): the dynamic int-gather of tok_embedding and the rope/mask cache
  # index_select stay in plain JAX on the host (no clean tiny-kernel equivalent).
  x_emb = jnp.take(emb_table, idx, axis=0)                       # (B, T, D)
  inv_freq = 1.0 / (ROPE_BASE ** (jnp.arange(0, HD, 2, dtype=jnp.float32) / HD))
  angles = jnp.arange(T, dtype=jnp.float32)[:, None] * inv_freq[None, :]
  cos = jnp.cos(angles)[input_pos]                               # (T, HD2)
  sin = jnp.sin(angles)[input_pos]

  # Head-tiled (T, D) RoPE tables with rotate-half signs folded in:
  # per 32-lane head block  cos|cos,  -sin|0,  0|sin.
  zeros = jnp.zeros_like(sin)
  cos_td = jnp.tile(jnp.concatenate([cos, cos], -1), (1, H))     # (T, D)
  sin_a_td = jnp.tile(jnp.concatenate([-sin, zeros], -1), (1, H))
  sin_b_td = jnp.tile(jnp.concatenate([zeros, sin], -1), (1, H))

  # Block-diagonal causal mask over the folded (B*T) axis: causal within a
  # batch element, -inf across batch elements.
  rows = jnp.arange(BT)
  rb, rt = rows // T, rows % T
  mask_bd = jnp.where((rb[:, None] == rb[None, :]) & (rt[None, :] <= rt[:, None]),
                      jnp.float32(0.0), jnp.float32(-jnp.inf))   # (BT, BT)

  # Per-batch causal mask for the plain-JAX reference.
  mask_t = jnp.where(jnp.arange(T)[None, :] > jnp.arange(T)[:, None],
                     jnp.float32(-jnp.inf), jnp.float32(0.0))    # (T, T)

  params = (g_pre, wqkv_bf, wo_bf, g_post, g_final, w13_bf, w2_bf, wlm_bf)
  out = toy_forward(x_emb.reshape(BT, D), cos_td, sin_a_td, sin_b_td,
                    mask_bd, params)
  out = jax.block_until_ready(out).reshape(B, T, VOCAB)

  # Correctness check vs. f32 reference using the same bf16-rounded weights
  # (reference applies the softmax scale itself, so it gets the unscaled wq).
  ref = _reference_forward(
      x_emb, cos, sin, mask_t,
      wq.astype(jnp.bfloat16).astype(jnp.float32),
      wqkv_bf[:, D:2 * D].astype(jnp.float32),
      wqkv_bf[:, 2 * D:].astype(jnp.float32),
      wo_bf.astype(jnp.float32),
      w13_bf[:, :FF].astype(jnp.float32),
      w13_bf[:, FF:].astype(jnp.float32),
      w2_bf.astype(jnp.float32),
      wlm_bf.astype(jnp.float32))
  max_err = float(jnp.max(jnp.abs(out - ref)))

  assert out.shape == (B, T, VOCAB), out.shape
  assert bool(jnp.all(jnp.isfinite(out)))
  assert max_err < 5e-2, f"max |out - ref| = {max_err}"
  print("KERNEL_OK")
</pallas_src>

<mosaic_0001>
module attributes {stable_mosaic.version = 11 : i64} {
  func.func @_toy_kernel(%arg0: i32, %arg1: memref<32x128xf32, #tpu.memory_space<vmem>>, %arg2: memref<16x128xf32, #tpu.memory_space<vmem>>, %arg3: memref<16x128xf32, #tpu.memory_space<vmem>>, %arg4: memref<16x128xf32, #tpu.memory_space<vmem>>, %arg5: memref<32x32xf32, #tpu.memory_space<vmem>>, %arg6: memref<1x128xf32, #tpu.memory_space<vmem>>, %arg7: memref<128x384xbf16, #tpu.memory_space<vmem>>, %arg8: memref<128x128xbf16, #tpu.memory_space<vmem>>, %arg9: memref<1x128xf32, #tpu.memory_space<vmem>>, %arg10: memref<1x128xf32, #tpu.memory_space<vmem>>, %arg11: memref<128x512xbf16, #tpu.memory_space<any>>, %arg12: memref<256x128xbf16, #tpu.memory_space<any>>, %arg13: memref<128x256xbf16, #tpu.memory_space<any>>, %arg14: memref<32x256xf32, #tpu.memory_space<vmem>>, %arg15: memref<128x512xbf16, #tpu.memory_space<vmem>>, %arg16: memref<256x128xbf16, #tpu.memory_space<vmem>>, %arg17: memref<128x256xbf16, #tpu.memory_space<vmem>>, %arg18: memref<3x!tpu.dma_semaphore, #tpu.memory_space<semaphore_mem>>) attributes {dimension_semantics = [#tpu.dimension_semantics<arbitrary>], iteration_bounds = array<i64: 1>, scalar_prefetch = 0 : i64, scratch_operands = 4 : i64, tpu.core_type = #tpu.core_type<tc>, window_params = [{pipeline_mode = #tpu.pipeline_mode<synchronous>, transform_indices = @transform_0, window_bounds = array<i64: 32, 128>}, {pipeline_mode = #tpu.pipeline_mode<synchronous>, transform_indices = @transform_1, window_bounds = array<i64: 16, 128>}, {pipeline_mode = #tpu.pipeline_mode<synchronous>, transform_indices = @transform_2, window_bounds = array<i64: 16, 128>}, {pipeline_mode = #tpu.pipeline_mode<synchronous>, transform_indices = @transform_3, window_bounds = array<i64: 16, 128>}, {pipeline_mode = #tpu.pipeline_mode<synchronous>, transform_indices = @transform_4, window_bounds = array<i64: 32, 32>}, {pipeline_mode = #tpu.pipeline_mode<synchronous>, transform_indices = @transform_5, window_bounds = array<i64: 1, 128>}, {pipeline_mode = #tpu.pipeline_mode<synchronous>, transform_indices = @transform_6, window_bounds = array<i64: 128, 384>}, {pipeline_mode = #tpu.pipeline_mode<synchronous>, transform_indices = @transform_7, window_bounds = array<i64: 128, 128>}, {pipeline_mode = #tpu.pipeline_mode<synchronous>, transform_indices = @transform_8, window_bounds = array<i64: 1, 128>}, {pipeline_mode = #tpu.pipeline_mode<synchronous>, transform_indices = @transform_9, window_bounds = array<i64: 1, 128>}, {}, {}, {}, {pipeline_mode = #tpu.pipeline_mode<synchronous>, transform_indices = @transform_13, window_bounds = array<i64: 32, 256>}]} {
    %c0_i32 = arith.constant 0 : i32
    %0 = tpu.memref_slice %arg18[%c0_i32] : memref<3x!tpu.dma_semaphore, #tpu.memory_space<semaphore_mem>> -> memref<1x!tpu.dma_semaphore, #tpu.memory_space<semaphore_mem>>
    %1 = tpu.memref_squeeze %0 : memref<1x!tpu.dma_semaphore, #tpu.memory_space<semaphore_mem>> -> memref<!tpu.dma_semaphore, #tpu.memory_space<semaphore_mem>>
    tpu.enqueue_dma source(%arg11 : memref<128x512xbf16, #tpu.memory_space<any>>) target(%arg15 : memref<128x512xbf16, #tpu.memory_space<vmem>>) target_semaphore(%1 : memref<!tpu.dma_semaphore, #tpu.memory_space<semaphore_mem>>)
    %c1_i32 = arith.constant 1 : i32
    %2 = tpu.memref_slice %arg18[%c1_i32] : memref<3x!tpu.dma_semaphore, #tpu.memory_space<semaphore_mem>> -> memref<1x!tpu.dma_semaphore, #tpu.memory_space<semaphore_mem>>
    %3 = tpu.memref_squeeze %2 : memref<1x!tpu.dma_semaphore, #tpu.memory_space<semaphore_mem>> -> memref<!tpu.dma_semaphore, #tpu.memory_space<semaphore_mem>>
    tpu.enqueue_dma source(%arg12 : memref<256x128xbf16, #tpu.memory_space<any>>) target(%arg16 : memref<256x128xbf16, #tpu.memory_space<vmem>>) target_semaphore(%3 : memref<!tpu.dma_semaphore, #tpu.memory_space<semaphore_mem>>)
    %c2_i32 = arith.constant 2 : i32
    %4 = tpu.memref_slice %arg18[%c2_i32] : memref<3x!tpu.dma_semaphore, #tpu.memory_space<semaphore_mem>> -> memref<1x!tpu.dma_semaphore, #tpu.memory_space<semaphore_mem>>
    %5 = tpu.memref_squeeze %4 : memref<1x!tpu.dma_semaphore, #tpu.memory_space<semaphore_mem>> -> memref<!tpu.dma_semaphore, #tpu.memory_space<semaphore_mem>>
    tpu.enqueue_dma source(%arg13 : memref<128x256xbf16, #tpu.memory_space<any>>) target(%arg17 : memref<128x256xbf16, #tpu.memory_space<vmem>>) target_semaphore(%5 : memref<!tpu.dma_semaphore, #tpu.memory_space<semaphore_mem>>)
    %c0 = arith.constant 0 : index
    %c0_0 = arith.constant 0 : index
    %6 = vector.load %arg1[%c0, %c0_0] : memref<32x128xf32, #tpu.memory_space<vmem>>, vector<32x128xf32>
    %7 = arith.mulf %6, %6 : vector<32x128xf32>
    %cst = arith.constant dense<0.000000e+00> : vector<32xf32>
    %8 = vector.multi_reduction <add>, %7, %cst [1] : vector<32x128xf32> to vector<32xf32>
    %9 = vector.shape_cast %8 : vector<32xf32> to vector<32x1xf32>
    %cst_1 = arith.constant 1.280000e+02 : f32
    %10 = vector.broadcast %cst_1 : f32 to vector<32x1xf32>
    %11 = arith.divf %9, %10 : vector<32x1xf32>
    %cst_2 = arith.constant 9.99999997E-7 : f32
    %12 = vector.broadcast %cst_2 : f32 to vector<32x1xf32>
    %13 = arith.addf %11, %12 : vector<32x1xf32>
    %14 = math.rsqrt %13 : vector<32x1xf32>
    %15 = vector.broadcast %14 : vector<32x1xf32> to vector<32x128xf32>
    %16 = arith.mulf %6, %15 : vector<32x128xf32>
    %c0_3 = arith.constant 0 : index
    %c0_4 = arith.constant 0 : index
    %17 = vector.load %arg6[%c0_3, %c0_4] : memref<1x128xf32, #tpu.memory_space<vmem>>, vector<1x128xf32>
    %18 = vector.broadcast %17 : vector<1x128xf32> to vector<32x128xf32>
    %19 = arith.mulf %16, %18 : vector<32x128xf32>
    %20 = arith.truncf %19 : vector<32x128xf32> to vector<32x128xbf16>
    %c0_5 = arith.constant 0 : index
    %c0_6 = arith.constant 0 : index
    %21 = vector.load %arg7[%c0_5, %c0_6] : memref<128x384xbf16, #tpu.memory_space<vmem>>, vector<128x384xbf16>
    %cst_7 = arith.constant dense<0.000000e+00> : vector<32x384xf32>
    %22 = tpu.matmul %20, %21, %cst_7 {dimension_numbers = #tpu.dot_dimension_numbers<[1], [0], [0], [1], [0, 0, 1, 1], [], []>} : vector<32x128xbf16>, vector<128x384xbf16>, vector<32x384xf32> -> vector<32x384xf32>
    %23 = vector.extract_strided_slice %22 {offsets = [0, 0], sizes = [32, 128], strides = [1, 1]} : vector<32x384xf32> to vector<32x128xf32>
    %24 = vector.extract_strided_slice %22 {offsets = [0, 128], sizes = [32, 128], strides = [1, 1]} : vector<32x384xf32> to vector<32x128xf32>
    %25 = vector.extract_strided_slice %22 {offsets = [0, 256], sizes = [32, 128], strides = [1, 1]} : vector<32x384xf32> to vector<32x128xf32>
    %c0_8 = arith.constant 0 : index
    %c0_9 = arith.constant 0 : index
    %26 = vector.load %arg2[%c0_8, %c0_9] : memref<16x128xf32, #tpu.memory_space<vmem>>, vector<16x128xf32>
    %27 = tpu.concatenate %26, %26 in 0 : vector<16x128xf32>, vector<16x128xf32> -> vector<32x128xf32>
    %c0_10 = arith.constant 0 : index
    %c0_11 = arith.constant 0 : index
    %28 = vector.load %arg3[%c0_10, %c0_11] : memref<16x128xf32, #tpu.memory_space<vmem>>, vector<16x128xf32>
    %29 = tpu.concatenate %28, %28 in 0 : vector<16x128xf32>, vector<16x128xf32> -> vector<32x128xf32>
    %c0_12 = arith.constant 0 : index
    %c0_13 = arith.constant 0 : index
    %30 = vector.load %arg4[%c0_12, %c0_13] : memref<16x128xf32, #tpu.memory_space<vmem>>, vector<16x128xf32>
    %31 = tpu.concatenate %30, %30 in 0 : vector<16x128xf32>, vector<16x128xf32> -> vector<32x128xf32>
    %c112_i32 = arith.constant 112 : i32
    %32 = tpu.dynamic_rotate %23 by %c112_i32 dim 1 : vector<32x128xf32>, i32 -> vector<32x128xf32>
    %c16_i32 = arith.constant 16 : i32
    %33 = tpu.dynamic_rotate %23 by %c16_i32 dim 1 : vector<32x128xf32>, i32 -> vector<32x128xf32>
    %34 = arith.mulf %23, %27 : vector<32x128xf32>
    %35 = arith.mulf %32, %29 : vector<32x128xf32>
    %36 = arith.addf %34, %35 : vector<32x128xf32>
    %37 = arith.mulf %33, %31 : vector<32x128xf32>
    %38 = arith.addf %36, %37 : vector<32x128xf32>
    %c112_i32_14 = arith.constant 112 : i32
    %39 = tpu.dynamic_rotate %24 by %c112_i32_14 dim 1 : vector<32x128xf32>, i32 -> vector<32x128xf32>
    %c16_i32_15 = arith.constant 16 : i32
    %40 = tpu.dynamic_rotate %24 by %c16_i32_15 dim 1 : vector<32x128xf32>, i32 -> vector<32x128xf32>
    %41 = arith.mulf %24, %27 : vector<32x128xf32>
    %42 = arith.mulf %39, %29 : vector<32x128xf32>
    %43 = arith.addf %41, %42 : vector<32x128xf32>
    %44 = arith.mulf %40, %31 : vector<32x128xf32>
    %45 = arith.addf %43, %44 : vector<32x128xf32>
    %46 = tpu.transpose %38, [1, 0] : vector<32x128xf32> -> vector<128x32xf32>
    %47 = vector.shape_cast %46 : vector<128x32xf32> to vector<4x32x32xf32>
    %48 = tpu.transpose %47, [0, 2, 1] : vector<4x32x32xf32> -> vector<4x32x32xf32>
    %49 = arith.truncf %48 : vector<4x32x32xf32> to vector<4x32x32xbf16>
    %50 = tpu.transpose %45, [1, 0] : vector<32x128xf32> -> vector<128x32xf32>
    %51 = vector.shape_cast %50 : vector<128x32xf32> to vector<4x32x32xf32>
    %52 = tpu.transpose %51, [0, 2, 1] : vector<4x32x32xf32> -> vector<4x32x32xf32>
    %53 = arith.truncf %52 : vector<4x32x32xf32> to vector<4x32x32xbf16>
    %54 = tpu.transpose %25, [1, 0] : vector<32x128xf32> -> vector<128x32xf32>
    %55 = vector.shape_cast %54 : vector<128x32xf32> to vector<4x32x32xf32>
    %56 = tpu.transpose %55, [0, 2, 1] : vector<4x32x32xf32> -> vector<4x32x32xf32>
    %57 = arith.truncf %56 : vector<4x32x32xf32> to vector<4x32x32xbf16>
    "tpu.trace_start"() <{level = 10 : i32, message = "hqd,hkd->hqk"}> : () -> ()
    %cst_16 = arith.constant dense<0.000000e+00> : vector<4x32x32xf32>
    %58 = tpu.matmul %49, %53, %cst_16 {dimension_numbers = #tpu.dot_dimension_numbers<[2], [2], [1], [1], [0, 0, 0, 1, 1, 1], [0], [0]>} : vector<4x32x32xbf16>, vector<4x32x32xbf16>, vector<4x32x32xf32> -> vector<4x32x32xf32>
    "tpu.trace_stop"() : () -> ()
    %c0_17 = arith.constant 0 : index
    %c0_18 = arith.constant 0 : index
    %59 = vector.load %arg5[%c0_17, %c0_18] : memref<32x32xf32, #tpu.memory_space<vmem>>, vector<32x32xf32>
    %60 = vector.shape_cast %59 : vector<32x32xf32> to vector<1x32x32xf32>
    %61 = vector.broadcast %60 : vector<1x32x32xf32> to vector<4x32x32xf32>
    %62 = arith.addf %58, %61 : vector<4x32x32xf32>
    %cst_19 = arith.constant dense<0xFF800000> : vector<4x32xf32>
    %63 = vector.multi_reduction <maximumf>, %62, %cst_19 [2] : vector<4x32x32xf32> to vector<4x32xf32>
    %64 = vector.shape_cast %63 : vector<4x32xf32> to vector<4x32x1xf32>
    %65 = vector.broadcast %64 : vector<4x32x1xf32> to vector<4x32x32xf32>
    %66 = arith.subf %62, %65 : vector<4x32x32xf32>
    %67 = math.exp %66 : vector<4x32x32xf32>
    %cst_20 = arith.constant dense<0.000000e+00> : vector<4x32xf32>
    %68 = vector.multi_reduction <add>, %67, %cst_20 [2] : vector<4x32x32xf32> to vector<4x32xf32>
    %69 = vector.shape_cast %68 : vector<4x32xf32> to vector<4x32x1xf32>
    %70 = tpu.reciprocal %69 {approx = true} : vector<4x32x1xf32> -> vector<4x32x1xf32>
    %71 = vector.broadcast %70 : vector<4x32x1xf32> to vector<4x32x32xf32>
    %72 = arith.mulf %67, %71 : vector<4x32x32xf32>
    %73 = arith.truncf %72 : vector<4x32x32xf32> to vector<4x32x32xbf16>
    "tpu.trace_start"() <{level = 10 : i32, message = "hqk,hkd->hqd"}> : () -> ()
    %cst_21 = arith.constant dense<0.000000e+00> : vector<4x32x32xf32>
    %74 = tpu.matmul %73, %57, %cst_21 {dimension_numbers = #tpu.dot_dimension_numbers<[2], [1], [1], [2], [0, 0, 0, 1, 1, 2], [0], [0]>} : vector<4x32x32xbf16>, vector<4x32x32xbf16>, vector<4x32x32xf32> -> vector<4x32x32xf32>
    "tpu.trace_stop"() : () -> ()
    %75 = tpu.transpose %74, [0, 2, 1] : vector<4x32x32xf32> -> vector<4x32x32xf32>
    %76 = vector.shape_cast %75 : vector<4x32x32xf32> to vector<128x32xf32>
    %77 = tpu.transpose %76, [1, 0] : vector<128x32xf32> -> vector<32x128xf32>
    %78 = arith.truncf %77 : vector<32x128xf32> to vector<32x128xbf16>
    %c0_22 = arith.constant 0 : index
    %c0_23 = arith.constant 0 : index
    %79 = vector.load %arg8[%c0_22, %c0_23] : memref<128x128xbf16, #tpu.memory_space<vmem>>, vector<128x128xbf16>
    %cst_24 = arith.constant dense<0.000000e+00> : vector<32x128xf32>
    %80 = tpu.matmul %78, %79, %cst_24 {dimension_numbers = #tpu.dot_dimension_numbers<[1], [0], [0], [1], [0, 0, 1, 1], [], []>} : vector<32x128xbf16>, vector<128x128xbf16>, vector<32x128xf32> -> vector<32x128xf32>
    %81 = arith.addf %6, %80 : vector<32x128xf32>
    %82 = arith.mulf %81, %81 : vector<32x128xf32>
    %cst_25 = arith.constant dense<0.000000e+00> : vector<32xf32>
    %83 = vector.multi_reduction <add>, %82, %cst_25 [1] : vector<32x128xf32> to vector<32xf32>
    %84 = vector.shape_cast %83 : vector<32xf32> to vector<32x1xf32>
    %cst_26 = arith.constant 1.280000e+02 : f32
    %85 = vector.broadcast %cst_26 : f32 to vector<32x1xf32>
    %86 = arith.divf %84, %85 : vector<32x1xf32>
    %cst_27 = arith.constant 9.99999997E-7 : f32
    %87 = vector.broadcast %cst_27 : f32 to vector<32x1xf32>
    %88 = arith.addf %86, %87 : vector<32x1xf32>
    %89 = math.rsqrt %88 : vector<32x1xf32>
    %90 = vector.broadcast %89 : vector<32x1xf32> to vector<32x128xf32>
    %91 = arith.mulf %81, %90 : vector<32x128xf32>
    %c0_28 = arith.constant 0 : index
    %c0_29 = arith.constant 0 : index
    %92 = vector.load %arg9[%c0_28, %c0_29] : memref<1x128xf32, #tpu.memory_space<vmem>>, vector<1x128xf32>
    %93 = vector.broadcast %92 : vector<1x128xf32> to vector<32x128xf32>
    %94 = arith.mulf %91, %93 : vector<32x128xf32>
    %95 = arith.truncf %94 : vector<32x128xf32> to vector<32x128xbf16>
    %c0_i32_30 = arith.constant 0 : i32
    %96 = tpu.memref_slice %arg18[%c0_i32_30] : memref<3x!tpu.dma_semaphore, #tpu.memory_space<semaphore_mem>> -> memref<1x!tpu.dma_semaphore, #tpu.memory_space<semaphore_mem>>
    %97 = tpu.memref_squeeze %96 : memref<1x!tpu.dma_semaphore, #tpu.memory_space<semaphore_mem>> -> memref<!tpu.dma_semaphore, #tpu.memory_space<semaphore_mem>>
    tpu.wait_dma2 semaphore(%97 : memref<!tpu.dma_semaphore, #tpu.memory_space<semaphore_mem>>) src(%arg11 : memref<128x512xbf16, #tpu.memory_space<any>>) dst(%arg15 : memref<128x512xbf16, #tpu.memory_space<vmem>>)
    %c0_31 = arith.constant 0 : index
    %c0_32 = arith.constant 0 : index
    %98 = vector.load %arg15[%c0_31, %c0_32] : memref<128x512xbf16, #tpu.memory_space<vmem>>, vector<128x512xbf16>
    %cst_33 = arith.constant dense<0.000000e+00> : vector<32x512xf32>
    %99 = tpu.matmul %95, %98, %cst_33 {dimension_numbers = #tpu.dot_dimension_numbers<[1], [0], [0], [1], [0, 0, 1, 1], [], []>} : vector<32x128xbf16>, vector<128x512xbf16>, vector<32x512xf32> -> vector<32x512xf32>
    %100 = vector.extract_strided_slice %99 {offsets = [0, 0], sizes = [32, 256], strides = [1, 1]} : vector<32x512xf32> to vector<32x256xf32>
    %101 = vector.extract_strided_slice %99 {offsets = [0, 256], sizes = [32, 256], strides = [1, 1]} : vector<32x512xf32> to vector<32x256xf32>
    %102 = arith.negf %100 : vector<32x256xf32>
    %103 = math.exp %102 : vector<32x256xf32>
    %cst_34 = arith.constant 1.000000e+00 : f32
    %104 = vector.broadcast %cst_34 : f32 to vector<32x256xf32>
    %105 = arith.addf %104, %103 : vector<32x256xf32>
    %106 = arith.divf %104, %105 : vector<32x256xf32>
    %107 = arith.mulf %100, %106 : vector<32x256xf32>
    %108 = arith.mulf %107, %101 : vector<32x256xf32>
    %109 = arith.truncf %108 : vector<32x256xf32> to vector<32x256xbf16>
    %c1_i32_35 = arith.constant 1 : i32
    %110 = tpu.memref_slice %arg18[%c1_i32_35] : memref<3x!tpu.dma_semaphore, #tpu.memory_space<semaphore_mem>> -> memref<1x!tpu.dma_semaphore, #tpu.memory_space<semaphore_mem>>
    %111 = tpu.memref_squeeze %110 : memref<1x!tpu.dma_semaphore, #tpu.memory_space<semaphore_mem>> -> memref<!tpu.dma_semaphore, #tpu.memory_space<semaphore_mem>>
    tpu.wait_dma2 semaphore(%111 : memref<!tpu.dma_semaphore, #tpu.memory_space<semaphore_mem>>) src(%arg12 : memref<256x128xbf16, #tpu.memory_space<any>>) dst(%arg16 : memref<256x128xbf16, #tpu.memory_space<vmem>>)
    %c0_36 = arith.constant 0 : index
    %c0_37 = arith.constant 0 : index
    %112 = vector.load %arg16[%c0_36, %c0_37] : memref<256x128xbf16, #tpu.memory_space<vmem>>, vector<256x128xbf16>
    %cst_38 = arith.constant dense<0.000000e+00> : vector<32x128xf32>
    %113 = tpu.matmul %109, %112, %cst_38 {dimension_numbers = #tpu.dot_dimension_numbers<[1], [0], [0], [1], [0, 0, 1, 1], [], []>} : vector<32x256xbf16>, vector<256x128xbf16>, vector<32x128xf32> -> vector<32x128xf32>
    %114 = arith.addf %81, %113 : vector<32x128xf32>
    %115 = arith.mulf %114, %114 : vector<32x128xf32>
    %cst_39 = arith.constant dense<0.000000e+00> : vector<32xf32>
    %116 = vector.multi_reduction <add>, %115, %cst_39 [1] : vector<32x128xf32> to vector<32xf32>
    %117 = vector.shape_cast %116 : vector<32xf32> to vector<32x1xf32>
    %cst_40 = arith.constant 1.280000e+02 : f32
    %118 = vector.broadcast %cst_40 : f32 to vector<32x1xf32>
    %119 = arith.divf %117, %118 : vector<32x1xf32>
    %cst_41 = arith.constant 9.99999997E-7 : f32
    %120 = vector.broadcast %cst_41 : f32 to vector<32x1xf32>
    %121 = arith.addf %119, %120 : vector<32x1xf32>
    %122 = math.rsqrt %121 : vector<32x1xf32>
    %123 = vector.broadcast %122 : vector<32x1xf32> to vector<32x128xf32>
    %124 = arith.mulf %114, %123 : vector<32x128xf32>
    %c0_42 = arith.constant 0 : index
    %c0_43 = arith.constant 0 : index
    %125 = vector.load %arg10[%c0_42, %c0_43] : memref<1x128xf32, #tpu.memory_space<vmem>>, vector<1x128xf32>
    %126 = vector.broadcast %125 : vector<1x128xf32> to vector<32x128xf32>
    %127 = arith.mulf %124, %126 : vector<32x128xf32>
    %128 = arith.truncf %127 : vector<32x128xf32> to vector<32x128xbf16>
    %c2_i32_44 = arith.constant 2 : i32
    %129 = tpu.memref_slice %arg18[%c2_i32_44] : memref<3x!tpu.dma_semaphore, #tpu.memory_space<semaphore_mem>> -> memref<1x!tpu.dma_semaphore, #tpu.memory_space<semaphore_mem>>
    %130 = tpu.memref_squeeze %129 : memref<1x!tpu.dma_semaphore, #tpu.memory_space<semaphore_mem>> -> memref<!tpu.dma_semaphore, #tpu.memory_space<semaphore_mem>>
    tpu.wait_dma2 semaphore(%130 : memref<!tpu.dma_semaphore, #tpu.memory_space<semaphore_mem>>) src(%arg13 : memref<128x256xbf16, #tpu.memory_space<any>>) dst(%arg17 : memref<128x256xbf16, #tpu.memory_space<vmem>>)
    %c0_45 = arith.constant 0 : index
    %c0_46 = arith.constant 0 : index
    %131 = vector.load %arg17[%c0_45, %c0_46] : memref<128x256xbf16, #tpu.memory_space<vmem>>, vector<128x256xbf16>
    %cst_47 = arith.constant dense<0.000000e+00> : vector<32x256xf32>
    %132 = tpu.matmul %128, %131, %cst_47 {dimension_numbers = #tpu.dot_dimension_numbers<[1], [0], [0], [1], [0, 0, 1, 1], [], []>} : vector<32x128xbf16>, vector<128x256xbf16>, vector<32x256xf32> -> vector<32x256xf32>
    %c0_48 = arith.constant 0 : index
    %c0_49 = arith.constant 0 : index
    %133 = vector.load %arg14[%c0_48, %c0_49] : memref<32x256xf32, #tpu.memory_space<vmem>>, vector<32x256xf32>
    tpu.vector_store %arg14[%c0_48, %c0_49], %132 {strides = array<i32>} : memref<32x256xf32, #tpu.memory_space<vmem>>, vector<32x256xf32>,
    return
  }
  func.func @transform_0(%arg0: i32) -> (i32, i32) {
    %c0_i32 = arith.constant 0 : i32
    %c0_i32_0 = arith.constant 0 : i32
    %c0_i32_1 = arith.constant 0 : i32
    return %c0_i32, %c0_i32_0 : i32, i32
  }
  func.func @transform_1(%arg0: i32) -> (i32, i32) {
    %c0_i32 = arith.constant 0 : i32
    %c0_i32_0 = arith.constant 0 : i32
    %c0_i32_1 = arith.constant 0 : i32
    return %c0_i32, %c0_i32_0 : i32, i32
  }
  func.func @transform_2(%arg0: i32) -> (i32, i32) {
    %c0_i32 = arith.constant 0 : i32
    %c0_i32_0 = arith.constant 0 : i32
    %c0_i32_1 = arith.constant 0 : i32
    return %c0_i32, %c0_i32_0 : i32, i32
  }
  func.func @transform_3(%arg0: i32) -> (i32, i32) {
    %c0_i32 = arith.constant 0 : i32
    %c0_i32_0 = arith.constant 0 : i32
    %c0_i32_1 = arith.constant 0 : i32
    return %c0_i32, %c0_i32_0 : i32, i32
  }
  func.func @transform_4(%arg0: i32) -> (i32, i32) {
    %c0_i32 = arith.constant 0 : i32
    %c0_i32_0 = arith.constant 0 : i32
    %c0_i32_1 = arith.constant 0 : i32
    return %c0_i32, %c0_i32_0 : i32, i32
  }
  func.func @transform_5(%arg0: i32) -> (i32, i32) {
    %c0_i32 = arith.constant 0 : i32
    %c0_i32_0 = arith.constant 0 : i32
    %c0_i32_1 = arith.constant 0 : i32
    return %c0_i32, %c0_i32_0 : i32, i32
  }
  func.func @transform_6(%arg0: i32) -> (i32, i32) {
    %c0_i32 = arith.constant 0 : i32
    %c0_i32_0 = arith.constant 0 : i32
    %c0_i32_1 = arith.constant 0 : i32
    return %c0_i32, %c0_i32_0 : i32, i32
  }
  func.func @transform_7(%arg0: i32) -> (i32, i32) {
    %c0_i32 = arith.constant 0 : i32
    %c0_i32_0 = arith.constant 0 : i32
    %c0_i32_1 = arith.constant 0 : i32
    return %c0_i32, %c0_i32_0 : i32, i32
  }
  func.func @transform_8(%arg0: i32) -> (i32, i32) {
    %c0_i32 = arith.constant 0 : i32
    %c0_i32_0 = arith.constant 0 : i32
    %c0_i32_1 = arith.constant 0 : i32
    return %c0_i32, %c0_i32_0 : i32, i32
  }
  func.func @transform_9(%arg0: i32) -> (i32, i32) {
    %c0_i32 = arith.constant 0 : i32
    %c0_i32_0 = arith.constant 0 : i32
    %c0_i32_1 = arith.constant 0 : i32
    return %c0_i32, %c0_i32_0 : i32, i32
  }
  func.func @transform_13(%arg0: i32) -> (i32, i32) {
    %c0_i32 = arith.constant 0 : i32
    %c0_i32_0 = arith.constant 0 : i32
    %c0_i32_1 = arith.constant 0 : i32
    return %c0_i32, %c0_i32_0 : i32, i32
  }
}

</mosaic_0001>

<llo_original>
// kernel: tpu_custom_call.1
$region0: #{tpu_custom_call.1}
  #allocation0 [shape = 'u32[]', space=smem, size = 0x4, offset = 0x4, fixed_abs, tag = 'smem constant byte address 0x4 - core index']
  #allocation1 [shape = 'u32[144,128]{1,0:T(1,128)}', space=vmem, size = 0x12000, scoped, tag = 'internal scratch']
  #allocation2 [shape = 'bf16[128,512]{1,0:T(16,128)(2,1)}', space=vmem, size = 0x20000, scoped, tag = 'scratch operand']
  #allocation3 [shape = 'bf16[256,128]{1,0:T(16,128)(2,1)}', space=vmem, size = 0x10000, scoped, tag = 'scratch operand']
  #allocation4 [shape = 'bf16[128,256]{1,0:T(16,128)(2,1)}', space=vmem, size = 0x10000, scoped, tag = 'scratch operand']
  #allocation5 [shape = 's32[3]{0}', space=sflag, size = 0xc, scoped, tag = 'scratch operand']
  #allocation19 [shape = 's32[]', space=sflag, size = 0x4, offset = 0, fixed_abs, tag = 'sflag constant byte address 0x0 - dummy sync flag']
  #allocation21 [shape = 's32[]', space=sflag, size = 0x4, offset = 0, fixed_abs, tag = 'sflag constant byte address 0x0 - dummy sync flag']
  #allocation22 [shape = 's32[]', space=sflag, size = 0x4, offset = 0, fixed_abs, tag = 'sflag constant byte address 0x0 - dummy sync flag']
  #allocation23 [shape = 'u32[]', space=smem, size = 0x4, offset = 0x44, fixed_abs, tag = 'smem constant byte address 0x44 - assertion arg 0']
  #allocation24 [shape = 'u32[]', space=smem, size = 0x4, offset = 0x48, fixed_abs, tag = 'smem constant byte address 0x48 - assertion arg 1']
  #allocation25 [shape = 's32[]', space=sflag, size = 0x4, offset = 0, fixed_abs, tag = 'sflag constant byte address 0x0 - dummy sync flag']
  %s0 = inlined_call_operand.hbm [shape: f32[32,128], index: 0, kind: input, shape index: {}]
  %s1 = inlined_call_operand.hbm [shape: f32[16,128], index: 1, kind: input, shape index: {}]
  %s2 = inlined_call_operand.hbm [shape: f32[16,128], index: 2, kind: input, shape index: {}]
  %s3 = inlined_call_operand.hbm [shape: f32[16,128], index: 3, kind: input, shape index: {}]
  %s4 = inlined_call_operand.hbm [shape: f32[32,32], index: 4, kind: input, shape index: {}]
  %s5 = inlined_call_operand.vmem [shape: f32[1,128], index: 5, kind: input, shape index: {}]
  %s6 = inlined_call_operand.hbm [shape: bf16[128,384], index: 6, kind: input, shape index: {}]
  %s7 = inlined_call_operand.hbm [shape: bf16[128,128], index: 7, kind: input, shape index: {}]
  %s8 = inlined_call_operand.vmem [shape: f32[1,128], index: 8, kind: input, shape index: {}]
  %s9 = inlined_call_operand.vmem [shape: f32[1,128], index: 9, kind: input, shape index: {}]
  %s10 = inlined_call_operand.hbm [shape: bf16[128,512], index: 10, kind: input, shape index: {}]
  %s11 = inlined_call_operand.hbm [shape: bf16[256,128], index: 11, kind: input, shape index: {}]
  %s12 = inlined_call_operand.hbm [shape: bf16[128,256], index: 12, kind: input, shape index: {}]
  %s13 = inlined_call_operand.hbm [shape: f32[32,256], index: 13, kind: output, shape index: {}]
  %s14 = sld [smem:[#allocation0]]
  $region82: #{tpu_custom_call.1} parent=0
    _
  %s16 = ssub.s32 1, %s14
  %s17 = scalar_select 0, %s16, %s14
  $region1: #{tpu_custom_call.1} parent=0
    #allocation6 [shape = 'u8[16384]{0}', space=vmem, size = 0x4000, scoped, tag = 'input window, operand 0, single buffered']
    #allocation7 [shape = 's32[1]{0}', space=sflag, size = 0x4, scoped, tag = 'scoped memory for tpu_custom_call.1']
    #allocation8 [shape = 's32[1]{0}', space=sflag, size = 0x4, scoped, tag = 'scoped memory for tpu_custom_call.1']
    #allocation9 [shape = 'u8[8192]{0}', space=vmem, size = 0x2000, scoped, tag = 'input window, operand 1, single buffered']
    #allocation10 [shape = 's32[1]{0}', space=sflag, size = 0x4, scoped, tag = 'scoped memory for tpu_custom_call.1']
    #allocation11 [shape = 'u8[8192]{0}', space=vmem, size = 0x2000, scoped, tag = 'input window, operand 2, single buffered']
    #allocation12 [shape = 'u8[8192]{0}', space=vmem, size = 0x2000, scoped, tag = 'input window, operand 3, single buffered']
    #allocation13 [shape = 's32[1]{0}', space=sflag, size = 0x4, scoped, tag = 'scoped memory for tpu_custom_call.1']
    #allocation14 [shape = 'u8[16384]{0}', space=vmem, size = 0x4000, scoped, tag = 'input window, operand 4, single buffered']
    #allocation15 [shape = 'u8[98304]{0}', space=vmem, size = 0x18000, scoped, tag = 'input window, operand 6, single buffered']
    #allocation16 [shape = 's32[1]{0}', space=sflag, size = 0x4, scoped, tag = 'scoped memory for tpu_custom_call.1']
    #allocation17 [shape = 'u8[32768]{0}', space=vmem, size = 0x8000, scoped, tag = 'input window, operand 7, single buffered']
    #allocation18 [shape = 'u8[32768]{0}', space=vmem, size = 0x8000, scoped, tag = 'output window, operand 0, single buffered']
    #allocation20 [shape = 'u32[9]{0}', space=smem, size = 0x24, scoped, tag = 'DMA stride descriptor']
    #allocation26 [shape = 'u32[9]{0}', space=smem, size = 0x24, scoped, tag = 'DMA stride descriptor']
    %18 = vsyncpa [#allocation7], 0
    %19 = vsyncpa [#allocation10], 0
    %20 = vsyncpa [#allocation13], 0
    %21 = vsyncpa [#allocation16], 0
    %22 = vsyncpa [#allocation8], 0
    // Predicated region
    $region2: #{tpu_custom_call.1} parent=1 // pred_check
      _
    $region3: #{tpu_custom_call.1} parent=1 // pred_check_branch
      %24 = sbr.rel (0) target = $region5
    $region4: #{tpu_custom_call.1} parent=1 // pred_region
      %s26 = ssub.s32 512, 512
      %27 = vsyncadd [#allocation7], %s26
      %s28 = sshll.u32 [#allocation6], 4
      %s29 = int_to_ptr.vmem [resolvable:$true] %s28
      %34 = dma.hbm_to_vmem [thread:$0]  %s0, 512, %s29, [#allocation7], 128, 128, 8
    $region5: #{tpu_custom_call.1} parent=1 // pred_fallthru
      _
    // Predicated region
    $region6: #{tpu_custom_call.1} parent=1 // pred_check
      _
    $region7: #{tpu_custom_call.1} parent=1 // pred_check_branch
      %36 = sbr.rel (0) target = $region9
    $region8: #{tpu_custom_call.1} parent=1 // pred_region
      %s38 = ssub.s32 256, 256
      %39 = vsyncadd [#allocation10], %s38
      %s40 = sshll.u32 [#allocation9], 4
      %s41 = int_to_ptr.vmem [resolvable:$true] %s40
      %46 = dma.hbm_to_vmem [thread:$0]  %s1, 256, %s41, [#allocation10], 128, 128, 8
    $region9: #{tpu_custom_call.1} parent=1 // pred_fallthru
      _
    // Predicated region
    $region10: #{tpu_custom_call.1} parent=1 // pred_check
      _
    $region11: #{tpu_custom_call.1} parent=1 // pred_check_branch
      %48 = sbr.rel (0) target = $region13
    $region12: #{tpu_custom_call.1} parent=1 // pred_region
      %s50 = ssub.s32 256, 256
      %51 = vsyncadd [#allocation10], %s50
      %s52 = sshll.u32 [#allocation11], 4
      %s53 = int_to_ptr.vmem [resolvable:$true] %s52
      %58 = dma.hbm_to_vmem [thread:$0]  %s2, 256, %s53, [#allocation10], 128, 128, 8
    $region13: #{tpu_custom_call.1} parent=1 // pred_fallthru
      _
    // Predicated region
    $region14: #{tpu_custom_call.1} parent=1 // pred_check
      _
    $region15: #{tpu_custom_call.1} parent=1 // pred_check_branch
      %60 = sbr.rel (0) target = $region17
    $region16: #{tpu_custom_call.1} parent=1 // pred_region
      %s62 = ssub.s32 256, 256
      %63 = vsyncadd [#allocation13], %s62
      %s64 = sshll.u32 [#allocation12], 4
      %s65 = int_to_ptr.vmem [resolvable:$true] %s64
      %70 = dma.hbm_to_vmem [thread:$0]  %s3, 256, %s65, [#allocation13], 128, 128, 8
    $region17: #{tpu_custom_call.1} parent=1 // pred_fallthru
      _
    // Predicated region
    $region18: #{tpu_custom_call.1} parent=1 // pred_check
      _
    $region19: #{tpu_custom_call.1} parent=1 // pred_check_branch
      %72 = sbr.rel (0) target = $region21
    $region20: #{tpu_custom_call.1} parent=1 // pred_region
      %s74 = ssub.s32 512, 512
      %75 = vsyncadd [#allocation13], %s74
      %s76 = sshll.u32 [#allocation14], 4
      %s77 = int_to_ptr.vmem [resolvable:$true] %s76
      %82 = dma.hbm_to_vmem [thread:$0]  %s4, 512, %s77, [#allocation13], 128, 128, 8
    $region21: #{tpu_custom_call.1} parent=1 // pred_fallthru
      _
    // Predicated region
    $region22: #{tpu_custom_call.1} parent=1 // pred_check
      _
    $region23: #{tpu_custom_call.1} parent=1 // pred_check_branch
      %84 = sbr.rel (0) target = $region25
    $region24: #{tpu_custom_call.1} parent=1 // pred_region
      _
    $region25: #{tpu_custom_call.1} parent=1 // pred_fallthru
      _
    // Predicated region
    $region26: #{tpu_custom_call.1} parent=1 // pred_check
      _
    $region27: #{tpu_custom_call.1} parent=1 // pred_check_branch
      %86 = sbr.rel (0) target = $region29
    $region28: #{tpu_custom_call.1} parent=1 // pred_region
      %s88 = ssub.s32 3072, 3072
      %89 = vsyncadd [#allocation16], %s88
      %s90 = sshll.u32 [#allocation15], 4
      %s91 = int_to_ptr.vmem [resolvable:$true] %s90
      %96 = dma.hbm_to_vmem [thread:$0]  %s6, 3072, %s91, [#allocation16], 192, 192, 12
    $region29: #{tpu_custom_call.1} parent=1 // pred_fallthru
      _
    // Predicated region
    $region30: #{tpu_custom_call.1} parent=1 // pred_check
      _
    $region31: #{tpu_custom_call.1} parent=1 // pred_check_branch
      %98 = sbr.rel (0) target = $region33
    $region32: #{tpu_custom_call.1} parent=1 // pred_region
      %s100 = ssub.s32 1024, 1024
      %101 = vsyncadd [#allocation16], %s100
      %s102 = sshll.u32 [#allocation17], 4
      %s103 = int_to_ptr.vmem [resolvable:$true] %s102
      %108 = dma.hbm_to_vmem [thread:$0]  %s7, 1024, %s103, [#allocation16], 64, 64, 4
    $region33: #{tpu_custom_call.1} parent=1 // pred_fallthru
      _
    // Predicated region
    $region34: #{tpu_custom_call.1} parent=1 // pred_check
      _
    $region35: #{tpu_custom_call.1} parent=1 // pred_check_branch
      %110 = sbr.rel (0) target = $region37
    $region36: #{tpu_custom_call.1} parent=1 // pred_region
      _
    $region37: #{tpu_custom_call.1} parent=1 // pred_fallthru
      _
    // Predicated region
    $region38: #{tpu_custom_call.1} parent=1 // pred_check
      _
    $region39: #{tpu_custom_call.1} parent=1 // pred_check_branch
      %112 = sbr.rel (0) target = $region41
    $region40: #{tpu_custom_call.1} parent=1 // pred_region
      _
    $region41: #{tpu_custom_call.1} parent=1 // pred_fallthru
      _
    // Predicated region
    $region42: #{tpu_custom_call.1} parent=1 // pred_check
      _
    $region43: #{tpu_custom_call.1} parent=1 // pred_check_branch
      %114 = sbr.rel (0) target = $region45
    $region44: #{tpu_custom_call.1} parent=1 // pred_region
      %115 = dma.done [#allocation7], 512
    $region45: #{tpu_custom_call.1} parent=1 // pred_fallthru
      _
    // Predicated region
    $region46: #{tpu_custom_call.1} parent=1 // pred_check
      _
    $region47: #{tpu_custom_call.1} parent=1 // pred_check_branch
      %117 = sbr.rel (0) target = $region49
    $region48: #{tpu_custom_call.1} parent=1 // pred_region
      %118 = dma.done [#allocation10], 256
    $region49: #{tpu_custom_call.1} parent=1 // pred_fallthru
      _
    // Predicated region
    $region50: #{tpu_custom_call.1} parent=1 // pred_check
      _
    $region51: #{tpu_custom_call.1} parent=1 // pred_check_branch
      %120 = sbr.rel (0) target = $region53
    $region52: #{tpu_custom_call.1} parent=1 // pred_region
      %121 = dma.done [#allocation10], 256
    $region53: #{tpu_custom_call.1} parent=1 // pred_fallthru
      _
    // Predicated region
    $region54: #{tpu_custom_call.1} parent=1 // pred_check
      _
    $region55: #{tpu_custom_call.1} parent=1 // pred_check_branch
      %123 = sbr.rel (0) target = $region57
    $region56: #{tpu_custom_call.1} parent=1 // pred_region
      %124 = dma.done [#allocation13], 256
    $region57: #{tpu_custom_call.1} parent=1 // pred_fallthru
      _
    // Predicated region
    $region58: #{tpu_custom_call.1} parent=1 // pred_check
      _
    $region59: #{tpu_custom_call.1} parent=1 // pred_check_branch
      %126 = sbr.rel (0) target = $region61
    $region60: #{tpu_custom_call.1} parent=1 // pred_region
      %127 = dma.done [#allocation13], 512
    $region61: #{tpu_custom_call.1} parent=1 // pred_fallthru
      _
    // Predicated region
    $region62: #{tpu_custom_call.1} parent=1 // pred_check
      _
    $region63: #{tpu_custom_call.1} parent=1 // pred_check_branch
      %129 = sbr.rel (0) target = $region65
    $region64: #{tpu_custom_call.1} parent=1 // pred_region
      %130 = dma.done [#allocation16], 3072
    $region65: #{tpu_custom_call.1} parent=1 // pred_fallthru
      _
    // Predicated region
    $region66: #{tpu_custom_call.1} parent=1 // pred_check
      _
    $region67: #{tpu_custom_call.1} parent=1 // pred_check_branch
      %132 = sbr.rel (0) target = $region69
    $region68: #{tpu_custom_call.1} parent=1 // pred_region
      %133 = dma.done [#allocation16], 1024
    $region69: #{tpu_custom_call.1} parent=1 // pred_fallthru
      _
    %s136 = sshll.u32 1, 14
    %s137 = sxor.u32 4294967295, %s136
    %s139 = sld [smem:[#allocation0]]
    %s140 = sadd.s32 2, %s139
    %s142 = sshll.u32 7, 26
    %s143 = sxor.u32 4294967295, %s142
    %s144 = sand.u32 0, %s143
    %s145 = sshll.u32 %s140, 26
    %s146 = sor.u32 %s144, %s145
    %s147 = sshll.u32 [#allocation2], 4
    %s148 = int_to_ptr.vmem [resolvable:$true] %s147
    %151 = sst [smem:[#allocation20]] 512
    %s152 = scalar_lea.smem [#allocation20], 1
    %153 = sst [smem:[%s152]] 512
    %s154 = scalar_lea.smem [#allocation20], 2
    %155 = sst [smem:[%s154]] 4
    %s156 = scalar_lea.smem [#allocation20], 3
    %157 = sst [smem:[%s156]] 64
    %s158 = scalar_lea.smem [#allocation20], 4
    %159 = sst [smem:[%s158]] 128
    %s160 = scalar_lea.smem [#allocation20], 5
    %161 = sst [smem:[%s160]] 2
    %s162 = scalar_lea.smem [#allocation20], 6
    %163 = sst [smem:[%s162]] 256
    %s164 = scalar_lea.smem [#allocation20], 7
    %165 = sst [smem:[%s164]] 64
    %s166 = scalar_lea.smem [#allocation20], 8
    %167 = sst [smem:[%s166]] 4
    %169 = dma.general %s10, 4096, %s148, [#allocation5], [#allocation19], [#allocation20], %s146, 0
    %s170 = scalar_lea.sflag [#allocation5], 1
    // Predicated region
    $region70: #{tpu_custom_call.1} parent=1 // pred_check
      _
    $region71: #{tpu_custom_call.1} parent=1 // pred_check_branch
      %172 = sbr.rel target = $region73
    $region72: #{tpu_custom_call.1} parent=1 // pred_region
      %173 = sst [smem:[#allocation23]] [#allocation22]
      %174 = sst [smem:[#allocation24]] [#allocation21]
    $region73: #{tpu_custom_call.1} parent=1 // pred_fallthru
      _
    %176 = shalt.err (0)
    %s178 = sshll.u32 [#allocation3], 4
    %s179 = int_to_ptr.vmem [resolvable:$true] %s178
    %181 = dma.hbm_to_vmem [thread:$0]  %s11, 2048, %s179, %s170
    %s182 = scalar_lea.sflag [#allocation5], 2
    %s184 = sshll.u32 1, 14
    %s185 = sxor.u32 4294967295, %s184
    %s187 = sadd.s32 2, %s139
    %s189 = sshll.u32 7, 26
    %s190 = sxor.u32 4294967295, %s189
    %s191 = sand.u32 0, %s190
    %s192 = sshll.u32 %s187, 26
    %s193 = sor.u32 %s191, %s192
    %s194 = sshll.u32 [#allocation4], 4
    %s195 = int_to_ptr.vmem [resolvable:$true] %s194
    %198 = sst [smem:[#allocation26]] 256
    %s199 = scalar_lea.smem [#allocation26], 1
    %200 = sst [smem:[%s199]] 256
    %s201 = scalar_lea.smem [#allocation26], 2
    %202 = sst [smem:[%s201]] 2
    %s203 = scalar_lea.smem [#allocation26], 3
    %204 = sst [smem:[%s203]] 64
    %s205 = scalar_lea.smem [#allocation26], 4
    %206 = sst [smem:[%s205]] 128
    %s207 = scalar_lea.smem [#allocation26], 5
    %208 = sst [smem:[%s207]] 2
    %s209 = scalar_lea.smem [#allocation26], 6
    %210 = sst [smem:[%s209]] 128
    %s211 = scalar_lea.smem [#allocation26], 7
    %212 = sst [smem:[%s211]] 64
    %s213 = scalar_lea.smem [#allocation26], 8
    %214 = sst [smem:[%s213]] 4
    %216 = dma.general %s12, 2048, %s195, %s182, [#allocation25], [#allocation26], %s193, 0
    %v217 = vld [vmem:[#allocation6] sm:$0xff]
    %v218 = vld [vmem:[#allocation6 + $0x8] sm:$0xff]
    %v219 = vld [vmem:[#allocation6 + $0x10] sm:$0xff]
    %v220 = vld [vmem:[#allocation6 + $0x18] sm:$0xff]
    %v221 = vmul.f32 %v217, %v217
    %v222 = vmul.f32 %v218, %v218
    %v223 = vmul.f32 %v219, %v219
    %v224 = vmul.f32 %v220, %v220
    %225 = vadd.xlane.f32.xlu0 %v221
    %v226 = vpop.xlane.xlu0 %225
    %227 = vadd.xlane.f32.xlu0 %v222
    %v228 = vpop.xlane.xlu0 %227
    %229 = vadd.xlane.f32.xlu0 %v223
    %v230 = vpop.xlane.xlu0 %229
    %231 = vadd.xlane.f32.xlu0 %v224
    %v232 = vpop.xlane.xlu0 %231
    %v233 = vrcp.pop 128.0
    %v234 = vmul.f32 %v226, %v233
    %v235 = vmul.f32 %v228, %v233
    %v236 = vmul.f32 %v230, %v233
    %v237 = vmul.f32 %v232, %v233
    %v238 = vadd.f32 %v234, 1e-06
    %v239 = vadd.f32 %v235, 1e-06
    %v240 = vadd.f32 %v236, 1e-06
    %v241 = vadd.f32 %v237, 1e-06
    %v242 = vrsqrt.pop %v238
    %v243 = vrsqrt.pop %v239
    %v244 = vrsqrt.pop %v240
    %v245 = vrsqrt.pop %v241
    %v246 = vmul.f32 %v217, %v242
    %v247 = vmul.f32 %v218, %v243
    %v248 = vmul.f32 %v219, %v244
    %v249 = vmul.f32 %v220, %v245
    %v250 = vld [vmem:[%s5] sm:$0x1]
    %v252 = vlaneseq
    %v253 = vshrl.u32 %v252, 7
    %v254 = vsub.s32 0, %v253
    %v255 = vrot.slane %v250, %v254
    %v257 = vmul.f32 %v246, %v255
    %v258 = vmul.f32 %v247, %v255
    %v259 = vmul.f32 %v248, %v255
    %v260 = vmul.f32 %v249, %v255
    %v261 = vpack.c.bf16 %v258, %v257
    %v262 = vpack.c.bf16 %v260, %v259
    %v263 = vld [vmem:[#allocation15] sm:$0xff]
    %v264 = vld [vmem:[#allocation15 + $0x8] sm:$0xf]
    %v265 = vld [vmem:[#allocation15 + $0xc] sm:$0xff]
    %v266 = vld [vmem:[#allocation15 + $0x14] sm:$0xf]
    %v267 = vld [vmem:[#allocation15 + $0x18] sm:$0xff]
    %v268 = vld [vmem:[#allocation15 + $0x20] sm:$0xf]
    %v269 = vld [vmem:[#allocation15 + $0x24] sm:$0xff]
    %v270 = vld [vmem:[#allocation15 + $0x2c] sm:$0xf]
    %v271 = vld [vmem:[#allocation15 + $0x30] sm:$0xff]
    %v272 = vld [vmem:[#allocation15 + $0x38] sm:$0xf]
    %v273 = vld [vmem:[#allocation15 + $0x3c] sm:$0xff]
    %v274 = vld [vmem:[#allocation15 + $0x44] sm:$0xf]
    %v275 = vld [vmem:[#allocation15 + $0x48] sm:$0xff]
    %v276 = vld [vmem:[#allocation15 + $0x50] sm:$0xf]
    %v277 = vld [vmem:[#allocation15 + $0x54] sm:$0xff]
    %v278 = vld [vmem:[#allocation15 + $0x5c] sm:$0xf]
    %v279 = vld [vmem:[#allocation15 + $0x60] sm:$0xff]
    %v280 = vld [vmem:[#allocation15 + $0x68] sm:$0xf]
    %v281 = vld [vmem:[#allocation15 + $0x6c] sm:$0xff]
    %v282 = vld [vmem:[#allocation15 + $0x74] sm:$0xf]
    %v283 = vld [vmem:[#allocation15 + $0x78] sm:$0xff]
    %v284 = vld [vmem:[#allocation15 + $0x80] sm:$0xf]
    %v285 = vld [vmem:[#allocation15 + $0x84] sm:$0xff]
    %v286 = vld [vmem:[#allocation15 + $0x8c] sm:$0xf]
    %v287 = vld [vmem:[#allocation15 + $0x90] sm:$0xff]
    %v288 = vld [vmem:[#allocation15 + $0x98] sm:$0xf]
    %v289 = vld [vmem:[#allocation15 + $0x9c] sm:$0xff]
    %v290 = vld [vmem:[#allocation15 + $0xa4] sm:$0xf]
    %v291 = vld [vmem:[#allocation15 + $0xa8] sm:$0xff]
    %v292 = vld [vmem:[#allocation15 + $0xb0] sm:$0xf]
    %v293 = vld [vmem:[#allocation15 + $0xb4] sm:$0xff]
    %v294 = vld [vmem:[#allocation15 + $0xbc] sm:$0xf]
    %v327 = vunpack.c.l.b16 %v263
    %v328 = vunpack.c.h.b16 %v263
    %v329 = vunpack.c.l.b16 %v264
    %v330 = vunpack.c.l.b16 %v265
    %v331 = vunpack.c.h.b16 %v265
    %v332 = vunpack.c.l.b16 %v266
    %v333 = vunpack.c.l.b16 %v267
    %v334 = vunpack.c.h.b16 %v267
    %v335 = vunpack.c.l.b16 %v268
    %v336 = vunpack.c.l.b16 %v269
    %v337 = vunpack.c.h.b16 %v269
    %v338 = vunpack.c.l.b16 %v270
    %v339 = vunpack.c.l.b16 %v271
    %v340 = vunpack.c.h.b16 %v271
    %v341 = vunpack.c.l.b16 %v272
    %v342 = vunpack.c.l.b16 %v273
    %v343 = vunpack.c.h.b16 %v273
    %v344 = vunpack.c.l.b16 %v274
    %v345 = vunpack.c.l.b16 %v275
    %v346 = vunpack.c.h.b16 %v275
    %v347 = vunpack.c.l.b16 %v276
    %v348 = vunpack.c.l.b16 %v277
    %v349 = vunpack.c.h.b16 %v277
    %v350 = vunpack.c.l.b16 %v278
    %v351 = vunpack.c.l.b16 %v279
    %v352 = vunpack.c.h.b16 %v279
    %v353 = vunpack.c.l.b16 %v280
    %v354 = vunpack.c.l.b16 %v281
    %v355 = vunpack.c.h.b16 %v281
    %v356 = vunpack.c.l.b16 %v282
    %v357 = vunpack.c.l.b16 %v283
    %v358 = vunpack.c.h.b16 %v283
    %v359 = vunpack.c.l.b16 %v284
    %v360 = vunpack.c.l.b16 %v285
    %v361 = vunpack.c.h.b16 %v285
    %v362 = vunpack.c.l.b16 %v286
    %v363 = vunpack.c.l.b16 %v287
    %v364 = vunpack.c.h.b16 %v287
    %v365 = vunpack.c.l.b16 %v288
    %v366 = vunpack.c.l.b16 %v289
    %v367 = vunpack.c.h.b16 %v289
    %v368 = vunpack.c.l.b16 %v290
    %v369 = vunpack.c.l.b16 %v291
    %v370 = vunpack.c.h.b16 %v291
    %v371 = vunpack.c.l.b16 %v292
    %v372 = vunpack.c.l.b16 %v293
    %v373 = vunpack.c.h.b16 %v293
    %v374 = vunpack.c.l.b16 %v294
    %v375 = vpack.c.b16 %v330, %v327
    %v376 = vpack.c.b16 %v331, %v328
    %v377 = vpack.c.b16 %v332, %v329
    %v378 = vpack.c.b16 %v336, %v333
    %v379 = vpack.c.b16 %v337, %v334
    %v380 = vpack.c.b16 %v338, %v335
    %v381 = vpack.c.b16 %v342, %v339
    %v382 = vpack.c.b16 %v343, %v340
    %v383 = vpack.c.b16 %v344, %v341
    %v384 = vpack.c.b16 %v348, %v345
    %v385 = vpack.c.b16 %v349, %v346
    %v386 = vpack.c.b16 %v350, %v347
    %v387 = vpack.c.b16 %v354, %v351
    %v388 = vpack.c.b16 %v355, %v352
    %v389 = vpack.c.b16 %v356, %v353
    %v390 = vpack.c.b16 %v360, %v357
    %v391 = vpack.c.b16 %v361, %v358
    %v392 = vpack.c.b16 %v362, %v359
    %v393 = vpack.c.b16 %v366, %v363
    %v394 = vpack.c.b16 %v367, %v364
    %v395 = vpack.c.b16 %v368, %v365
    %v396 = vpack.c.b16 %v372, %v369
    %v397 = vpack.c.b16 %v373, %v370
    %v398 = vpack.c.b16 %v374, %v371
    %423 = vmatprep.subr.bf16.mxu0 %v376
    %424 = vmatpush1.bf16.msra.mxu0 %v375
    %425 = vmatprep.subr.bf16.mxu0 %v379
    %426 = vmatpush1.bf16.msra.mxu0 %v378
    %427 = vmatprep.subr.bf16.mxu0 %v382
    %428 = vmatpush1.bf16.msra.mxu0 %v381
    %429 = vmatprep.subr.bf16.mxu0 %v385
    %430 = vmatpush1.bf16.msra.mxu0 %v384
    %431 = vmatprep.subr.bf16.mxu0 %v388
    %432 = vmatpush1.bf16.msra.mxu0 %v387
    %433 = vmatprep.subr.bf16.mxu0 %v391
    %434 = vmatpush1.bf16.msra.mxu0 %v390
    %435 = vmatprep.subr.bf16.mxu0 %v394
    %436 = vmatpush1.bf16.msra.mxu0 %v393
    %437 = vmatprep.subr.bf16.mxu0 %v397
    %438 = vmatpush1.bf16.msra.mxu0 %v396
    %439 = vmatprep.subr.bf16.mxu0 0
    %440 = vmatpush1.bf16.msra.mxu0 0
    %441 = vmatprep.subr.bf16.mxu0 0
    %442 = vmatpush1.bf16.msra.mxu0 0
    %443 = vmatprep.subr.bf16.mxu0 0
    %444 = vmatpush1.bf16.msra.mxu0 0
    %445 = vmatprep.subr.bf16.mxu0 0
    %446 = vmatpush1.bf16.msra.mxu0 0
    %447 = vmatprep.subr.bf16.mxu0 0
    %448 = vmatpush1.bf16.msra.mxu0 0
    %449 = vmatprep.subr.bf16.mxu0 0
    %450 = vmatpush1.bf16.msra.mxu0 0
    %451 = vmatprep.subr.bf16.mxu0 0
    %452 = vmatpush1.bf16.msra.mxu0 0
    %453 = vmatprep.subr.bf16.mxu0 0
    %454 = vmatpush1.bf16.msra.mxu0 0
    %455 = vmatprep.mubr.bf16.mxu0 0
    %456 = vmatmul.mubr.bf16.gmra.mrb[0].mxu0 %v261
    %v457 = vpop.f32.mrb[0].mxu0
    %v458 = vadd.f32 0.0, %v457
    %v459 = vpop.f32.mrb[0].mxu0
    %v460 = vadd.f32 0.0, %v459
    %v461 = vpop.f32.mrb[0].mxu0
    %v462 = vadd.f32 0.0, %v461
    %v463 = vpop.f32.mrb[0].mxu0
    %v464 = vadd.f32 0.0, %v463
    %465 = vmatprep.mubr.bf16.mxu0 0
    %466 = vmatmul.mubr.bf16.gmra.mrb[0].mxu0 %v262
    %v467 = vpop.f32.mrb[0].mxu0
    %v468 = vadd.f32 0.0, %v467
    %v469 = vpop.f32.mrb[0].mxu0
    %v470 = vadd.f32 0.0, %v469
    %v471 = vpop.f32.mrb[0].mxu0
    %v472 = vadd.f32 0.0, %v471
    %v473 = vpop.f32.mrb[0].mxu0
    %v474 = vadd.f32 0.0, %v473
    %475 = vdwg.mxu0
    %476 = vmatprep.subr.bf16.mxu0 0
    %477 = vmatpush1.bf16.msra.mxu0 %v377
    %478 = vmatprep.subr.bf16.mxu0 0
    %479 = vmatpush1.bf16.msra.mxu0 %v380
    %480 = vmatprep.subr.bf16.mxu0 0
    %481 = vmatpush1.bf16.msra.mxu0 %v383
    %482 = vmatprep.subr.bf16.mxu0 0
    %483 = vmatpush1.bf16.msra.mxu0 %v386
    %484 = vmatprep.subr.bf16.mxu0 0
    %485 = vmatpush1.bf16.msra.mxu0 %v389
    %486 = vmatprep.subr.bf16.mxu0 0
    %487 = vmatpush1.bf16.msra.mxu0 %v392
    %488 = vmatprep.subr.bf16.mxu0 0
    %489 = vmatpush1.bf16.msra.mxu0 %v395
    %490 = vmatprep.subr.bf16.mxu0 0
    %491 = vmatpush1.bf16.msra.mxu0 %v398
    %492 = vmatprep.subr.bf16.mxu0 0
    %493 = vmatpush1.bf16.msra.mxu0 0
    %494 = vmatprep.subr.bf16.mxu0 0
    %495 = vmatpush1.bf16.msra.mxu0 0
    %496 = vmatprep.subr.bf16.mxu0 0
    %497 = vmatpush1.bf16.msra.mxu0 0
    %498 = vmatprep.subr.bf16.mxu0 0
    %499 = vmatpush1.bf16.msra.mxu0 0
    %500 = vmatprep.subr.bf16.mxu0 0
    %501 = vmatpush1.bf16.msra.mxu0 0
    %502 = vmatprep.subr.bf16.mxu0 0
    %503 = vmatpush1.bf16.msra.mxu0 0
    %504 = vmatprep.subr.bf16.mxu0 0
    %505 = vmatpush1.bf16.msra.mxu0 0
    %506 = vmatprep.subr.bf16.mxu0 0
    %507 = vmatpush1.bf16.msra.mxu0 0
    %508 = vmatprep.mubr.bf16.mxu0 0
    %509 = vmatmul.mubr.bf16.gmra.mrb[0].mxu0 %v261
    %v510 = vpop.f32.mrb[0].mxu0
    %v511 = vadd.f32 0.0, %v510
    %v512 = vpop.f32.mrb[0].mxu0
    %v513 = vpop.f32.mrb[0].mxu0
    %v514 = vadd.f32 0.0, %v513
    %v515 = vpop.f32.mrb[0].mxu0
    %516 = vmatprep.mubr.bf16.mxu0 0
    %517 = vmatmul.mubr.bf16.gmra.mrb[0].mxu0 %v262
    %v518 = vpop.f32.mrb[0].mxu0
    %v519 = vadd.f32 0.0, %v518
    %v520 = vpop.f32.mrb[0].mxu0
    %v521 = vpop.f32.mrb[0].mxu0
    %v522 = vadd.f32 0.0, %v521
    %v523 = vpop.f32.mrb[0].mxu0
    %524 = vdwg.mxu0
    %v525 = vld [vmem:[#allocation9] sm:$0xff]
    %v526 = vld [vmem:[#allocation9 + $0x8] sm:$0xff]
    %v527 = vld [vmem:[#allocation11] sm:$0xff]
    %v528 = vld [vmem:[#allocation11 + $0x8] sm:$0xff]
    %v529 = vld [vmem:[#allocation12] sm:$0xff]
    %v530 = vld [vmem:[#allocation12 + $0x8] sm:$0xff]
    %531 = vrot.lane.b32.xlu0 %v458, 112
    %v532 = vpop.permute.xlu0 %531
    %533 = vrot.lane.b32.xlu0 %v462, 112
    %v534 = vpop.permute.xlu0 %533
    %535 = vrot.lane.b32.xlu0 %v468, 112
    %v536 = vpop.permute.xlu0 %535
    %537 = vrot.lane.b32.xlu0 %v472, 112
    %v538 = vpop.permute.xlu0 %537
    %539 = vrot.lane.b32.xlu0 %v458, 16
    %v540 = vpop.permute.xlu0 %539
    %541 = vrot.lane.b32.xlu0 %v462, 16
    %v542 = vpop.permute.xlu0 %541
    %543 = vrot.lane.b32.xlu0 %v468, 16
    %v544 = vpop.permute.xlu0 %543
    %545 = vrot.lane.b32.xlu0 %v472, 16
    %v546 = vpop.permute.xlu0 %545
    %v547 = vmul.f32 %v458, %v525
    %v548 = vmul.f32 %v462, %v526
    %v549 = vmul.f32 %v468, %v525
    %v550 = vmul.f32 %v472, %v526
    %v551 = vmul.f32 %v532, %v527
    %v552 = vmul.f32 %v534, %v528
    %v553 = vmul.f32 %v536, %v527
    %v554 = vmul.f32 %v538, %v528
    %v555 = vadd.f32 %v547, %v551
    %v556 = vadd.f32 %v548, %v552
    %v557 = vadd.f32 %v549, %v553
    %v558 = vadd.f32 %v550, %v554
    %v559 = vmul.f32 %v540, %v529
    %v560 = vmul.f32 %v542, %v530
    %v561 = vmul.f32 %v544, %v529
    %v562 = vmul.f32 %v546, %v530
    %v563 = vadd.f32 %v555, %v559
    %v564 = vadd.f32 %v556, %v560
    %v565 = vadd.f32 %v557, %v561
    %v566 = vadd.f32 %v558, %v562
    %567 = vrot.lane.b32.xlu0 %v460, 112
    %v568 = vpop.permute.xlu0 %567
    %569 = vrot.lane.b32.xlu0 %v464, 112
    %v570 = vpop.permute.xlu0 %569
    %571 = vrot.lane.b32.xlu0 %v470, 112
    %v572 = vpop.permute.xlu0 %571
    %573 = vrot.lane.b32.xlu0 %v474, 112
    %v574 = vpop.permute.xlu0 %573
    %575 = vrot.lane.b32.xlu0 %v460, 16
    %v576 = vpop.permute.xlu0 %575
    %577 = vrot.lane.b32.xlu0 %v464, 16
    %v578 = vpop.permute.xlu0 %577
    %579 = vrot.lane.b32.xlu0 %v470, 16
    %v580 = vpop.permute.xlu0 %579
    %581 = vrot.lane.b32.xlu0 %v474, 16
    %v582 = vpop.permute.xlu0 %581
    %v583 = vmul.f32 %v460, %v525
    %v584 = vmul.f32 %v464, %v526
    %v585 = vmul.f32 %v470, %v525
    %v586 = vmul.f32 %v474, %v526
    %v587 = vmul.f32 %v568, %v527
    %v588 = vmul.f32 %v570, %v528
    %v589 = vmul.f32 %v572, %v527
    %v590 = vmul.f32 %v574, %v528
    %v591 = vadd.f32 %v583, %v587
    %v592 = vadd.f32 %v584, %v588
    %v593 = vadd.f32 %v585, %v589
    %v594 = vadd.f32 %v586, %v590
    %v595 = vmul.f32 %v576, %v529
    %v596 = vmul.f32 %v578, %v530
    %v597 = vmul.f32 %v580, %v529
    %v598 = vmul.f32 %v582, %v530
    %v599 = vadd.f32 %v591, %v595
    %v600 = vadd.f32 %v592, %v596
    %v601 = vadd.f32 %v593, %v597
    %v602 = vadd.f32 %v594, %v598
    %603 = vxpose.xlu0.b32.start [1/16] %v563, 128
    %604 = vxpose.xlu0.b32.cont [2/16] %v564, 128
    %605 = vxpose.xlu0.b32.cont [3/16] %v565, 128
    %606 = vxpose.xlu0.b32.cont [4/16] %v566, 128
    %607 = vxpose.xlu0.b32.cont [5/16] 0.0, 128
    %608 = vxpose.xlu0.b32.cont [6/16] 0.0, 128
    %609 = vxpose.xlu0.b32.cont [7/16] 0.0, 128
    %610 = vxpose.xlu0.b32.cont [8/16] 0.0, 128
    %611 = vxpose.xlu0.b32.cont [9/16] 0.0, 128
    %612 = vxpose.xlu0.b32.cont [10/16] 0.0, 128
    %613 = vxpose.xlu0.b32.cont [11/16] 0.0, 128
    %614 = vxpose.xlu0.b32.cont [12/16] 0.0, 128
    %615 = vxpose.xlu0.b32.cont [13/16] 0.0, 128
    %616 = vxpose.xlu0.b32.cont [14/16] 0.0, 128
    %617 = vxpose.xlu0.b32.cont [15/16] 0.0, 128
    %618 = vxpose.xlu0.b32.end [16/16] 0.0, 128
    %v619 = vpop.trf.xlu0
    %v620 = vpop.trf.xlu0
    %v621 = vpop.trf.xlu0
    %v622 = vpop.trf.xlu0
    %v623 = vpop.trf.xlu0
    %v624 = vpop.trf.xlu0
    %v625 = vpop.trf.xlu0
    %v626 = vpop.trf.xlu0
    %v627 = vpop.trf.xlu0
    %v628 = vpop.trf.xlu0
    %v629 = vpop.trf.xlu0
    %v630 = vpop.trf.xlu0
    %v631 = vpop.trf.xlu0
    %v632 = vpop.trf.xlu0
    %v633 = vpop.trf.xlu0
    %v634 = vpop.trf.xlu0
    %635 = vxpose.xlu0.b32.start [1/16] %v619, 128
    %636 = vxpose.xlu0.b32.cont [2/16] %v620, 128
    %637 = vxpose.xlu0.b32.cont [3/16] %v621, 128
    %638 = vxpose.xlu0.b32.cont [4/16] %v622, 128
    %639 = vxpose.xlu0.b32.cont [5/16] 0.0, 128
    %640 = vxpose.xlu0.b32.cont [6/16] 0.0, 128
    %641 = vxpose.xlu0.b32.cont [7/16] 0.0, 128
    %642 = vxpose.xlu0.b32.cont [8/16] 0.0, 128
    %643 = vxpose.xlu0.b32.cont [9/16] 0.0, 128
    %644 = vxpose.xlu0.b32.cont [10/16] 0.0, 128
    %645 = vxpose.xlu0.b32.cont [11/16] 0.0, 128
    %646 = vxpose.xlu0.b32.cont [12/16] 0.0, 128
    %647 = vxpose.xlu0.b32.cont [13/16] 0.0, 128
    %648 = vxpose.xlu0.b32.cont [14/16] 0.0, 128
    %649 = vxpose.xlu0.b32.cont [15/16] 0.0, 128
    %650 = vxpose.xlu0.b32.end [16/16] 0.0, 128
    %v651 = vpop.trf.xlu0
    %v652 = vpop.trf.xlu0
    %v653 = vpop.trf.xlu0
    %v654 = vpop.trf.xlu0
    %v655 = vpop.trf.xlu0
    %v656 = vpop.trf.xlu0
    %v657 = vpop.trf.xlu0
    %v658 = vpop.trf.xlu0
    %v659 = vpop.trf.xlu0
    %v660 = vpop.trf.xlu0
    %v661 = vpop.trf.xlu0
    %v662 = vpop.trf.xlu0
    %v663 = vpop.trf.xlu0
    %v664 = vpop.trf.xlu0
    %v665 = vpop.trf.xlu0
    %v666 = vpop.trf.xlu0
    %667 = vxpose.xlu0.b32.start [1/16] %v623, 128
    %668 = vxpose.xlu0.b32.cont [2/16] %v624, 128
    %669 = vxpose.xlu0.b32.cont [3/16] %v625, 128
    %670 = vxpose.xlu0.b32.cont [4/16] %v626, 128
    %671 = vxpose.xlu0.b32.cont [5/16] 0.0, 128
    %672 = vxpose.xlu0.b32.cont [6/16] 0.0, 128
    %673 = vxpose.xlu0.b32.cont [7/16] 0.0, 128
    %674 = vxpose.xlu0.b32.cont [8/16] 0.0, 128
    %675 = vxpose.xlu0.b32.cont [9/16] 0.0, 128
    %676 = vxpose.xlu0.b32.cont [10/16] 0.0, 128
    %677 = vxpose.xlu0.b32.cont [11/16] 0.0, 128
    %678 = vxpose.xlu0.b32.cont [12/16] 0.0, 128
    %679 = vxpose.xlu0.b32.cont [13/16] 0.0, 128
    %680 = vxpose.xlu0.b32.cont [14/16] 0.0, 128
    %681 = vxpose.xlu0.b32.cont [15/16] 0.0, 128
    %682 = vxpose.xlu0.b32.end [16/16] 0.0, 128
    %v683 = vpop.trf.xlu0
    %v684 = vpop.trf.xlu0
    %v685 = vpop.trf.xlu0
    %v686 = vpop.trf.xlu0
    %v687 = vpop.trf.xlu0
    %v688 = vpop.trf.xlu0
    %v689 = vpop.trf.xlu0
    %v690 = vpop.trf.xlu0
    %v691 = vpop.trf.xlu0
    %v692 = vpop.trf.xlu0
    %v693 = vpop.trf.xlu0
    %v694 = vpop.trf.xlu0
    %v695 = vpop.trf.xlu0
    %v696 = vpop.trf.xlu0
    %v697 = vpop.trf.xlu0
    %v698 = vpop.trf.xlu0
    %699 = vxpose.xlu0.b32.start [1/16] %v627, 128
    %700 = vxpose.xlu0.b32.cont [2/16] %v628, 128
    %701 = vxpose.xlu0.b32.cont [3/16] %v629, 128
    %702 = vxpose.xlu0.b32.cont [4/16] %v630, 128
    %703 = vxpose.xlu0.b32.cont [5/16] 0.0, 128
    %704 = vxpose.xlu0.b32.cont [6/16] 0.0, 128
    %705 = vxpose.xlu0.b32.cont [7/16] 0.0, 128
    %706 = vxpose.xlu0.b32.cont [8/16] 0.0, 128
    %707 = vxpose.xlu0.b32.cont [9/16] 0.0, 128
    %708 = vxpose.xlu0.b32.cont [10/16] 0.0, 128
    %709 = vxpose.xlu0.b32.cont [11/16] 0.0, 128
    %710 = vxpose.xlu0.b32.cont [12/16] 0.0, 128
    %711 = vxpose.xlu0.b32.cont [13/16] 0.0, 128
    %712 = vxpose.xlu0.b32.cont [14/16] 0.0, 128
    %713 = vxpose.xlu0.b32.cont [15/16] 0.0, 128
    %714 = vxpose.xlu0.b32.end [16/16] 0.0, 128
    %v715 = vpop.trf.xlu0
    %v716 = vpop.trf.xlu0
    %v717 = vpop.trf.xlu0
    %v718 = vpop.trf.xlu0
    %v719 = vpop.trf.xlu0
    %v720 = vpop.trf.xlu0
    %v721 = vpop.trf.xlu0
    %v722 = vpop.trf.xlu0
    %v723 = vpop.trf.xlu0
    %v724 = vpop.trf.xlu0
    %v725 = vpop.trf.xlu0
    %v726 = vpop.trf.xlu0
    %v727 = vpop.trf.xlu0
    %v728 = vpop.trf.xlu0
    %v729 = vpop.trf.xlu0
    %v730 = vpop.trf.xlu0
    %731 = vxpose.xlu0.b32.start [1/16] %v631, 128
    %732 = vxpose.xlu0.b32.cont [2/16] %v632, 128
    %733 = vxpose.xlu0.b32.cont [3/16] %v633, 128
    %734 = vxpose.xlu0.b32.cont [4/16] %v634, 128
    %735 = vxpose.xlu0.b32.cont [5/16] 0.0, 128
    %736 = vxpose.xlu0.b32.cont [6/16] 0.0, 128
    %737 = vxpose.xlu0.b32.cont [7/16] 0.0, 128
    %738 = vxpose.xlu0.b32.cont [8/16] 0.0, 128
    %739 = vxpose.xlu0.b32.cont [9/16] 0.0, 128
    %740 = vxpose.xlu0.b32.cont [10/16] 0.0, 128
    %741 = vxpose.xlu0.b32.cont [11/16] 0.0, 128
    %742 = vxpose.xlu0.b32.cont [12/16] 0.0, 128
    %743 = vxpose.xlu0.b32.cont [13/16] 0.0, 128
    %744 = vxpose.xlu0.b32.cont [14/16] 0.0, 128
    %745 = vxpose.xlu0.b32.cont [15/16] 0.0, 128
    %746 = vxpose.xlu0.b32.end [16/16] 0.0, 128
    %v747 = vpop.trf.xlu0
    %v748 = vpop.trf.xlu0
    %v749 = vpop.trf.xlu0
    %v750 = vpop.trf.xlu0
    %v751 = vpop.trf.xlu0
    %v752 = vpop.trf.xlu0
    %v753 = vpop.trf.xlu0
    %v754 = vpop.trf.xlu0
    %v755 = vpop.trf.xlu0
    %v756 = vpop.trf.xlu0
    %v757 = vpop.trf.xlu0
    %v758 = vpop.trf.xlu0
    %v759 = vpop.trf.xlu0
    %v760 = vpop.trf.xlu0
    %v761 = vpop.trf.xlu0
    %v762 = vpop.trf.xlu0
    %v763 = vpack.c.bf16 %v652, %v651
    %v764 = vpack.c.bf16 %v654, %v653
    %v765 = vpack.c.bf16 %v684, %v683
    %v766 = vpack.c.bf16 %v686, %v685
    %v767 = vpack.c.bf16 %v716, %v715
    %v768 = vpack.c.bf16 %v718, %v717
    %v769 = vpack.c.bf16 %v748, %v747
    %v770 = vpack.c.bf16 %v750, %v749
    %771 = vxpose.xlu0.b32.start [1/16] %v599, 128
    %772 = vxpose.xlu0.b32.cont [2/16] %v600, 128
    %773 = vxpose.xlu0.b32.cont [3/16] %v601, 128
    %774 = vxpose.xlu0.b32.cont [4/16] %v602, 128
    %775 = vxpose.xlu0.b32.cont [5/16] 0.0, 128
    %776 = vxpose.xlu0.b32.cont [6/16] 0.0, 128
    %777 = vxpose.xlu0.b32.cont [7/16] 0.0, 128
    %778 = vxpose.xlu0.b32.cont [8/16] 0.0, 128
    %779 = vxpose.xlu0.b32.cont [9/16] 0.0, 128
    %780 = vxpose.xlu0.b32.cont [10/16] 0.0, 128
    %781 = vxpose.xlu0.b32.cont [11/16] 0.0, 128
    %782 = vxpose.xlu0.b32.cont [12/16] 0.0, 128
    %783 = vxpose.xlu0.b32.cont [13/16] 0.0, 128
    %784 = vxpose.xlu0.b32.cont [14/16] 0.0, 128
    %785 = vxpose.xlu0.b32.cont [15/16] 0.0, 128
    %786 = vxpose.xlu0.b32.end [16/16] 0.0, 128
    %v787 = vpop.trf.xlu0
    %v788 = vpop.trf.xlu0
    %v789 = vpop.trf.xlu0
    %v790 = vpop.trf.xlu0
    %v791 = vpop.trf.xlu0
    %v792 = vpop.trf.xlu0
    %v793 = vpop.trf.xlu0
    %v794 = vpop.trf.xlu0
    %v795 = vpop.trf.xlu0
    %v796 = vpop.trf.xlu0
    %v797 = vpop.trf.xlu0
    %v798 = vpop.trf.xlu0
    %v799 = vpop.trf.xlu0
    %v800 = vpop.trf.xlu0
    %v801 = vpop.trf.xlu0
    %v802 = vpop.trf.xlu0
    %803 = vxpose.xlu0.b32.start [1/16] %v787, 128
    %804 = vxpose.xlu0.b32.cont [2/16] %v788, 128
    %805 = vxpose.xlu0.b32.cont [3/16] %v789, 128
    %806 = vxpose.xlu0.b32.cont [4/16] %v790, 128
    %807 = vxpose.xlu0.b32.cont [5/16] 0.0, 128
    %808 = vxpose.xlu0.b32.cont [6/16] 0.0, 128
    %809 = vxpose.xlu0.b32.cont [7/16] 0.0, 128
    %810 = vxpose.xlu0.b32.cont [8/16] 0.0, 128
    %811 = vxpose.xlu0.b32.cont [9/16] 0.0, 128
    %812 = vxpose.xlu0.b32.cont [10/16] 0.0, 128
    %813 = vxpose.xlu0.b32.cont [11/16] 0.0, 128
    %814 = vxpose.xlu0.b32.cont [12/16] 0.0, 128
    %815 = vxpose.xlu0.b32.cont [13/16] 0.0, 128
    %816 = vxpose.xlu0.b32.cont [14/16] 0.0, 128
    %817 = vxpose.xlu0.b32.cont [15/16] 0.0, 128
    %818 = vxpose.xlu0.b32.end [16/16] 0.0, 128
    %v819 = vpop.trf.xlu0
    %v820 = vpop.trf.xlu0
    %v821 = vpop.trf.xlu0
    %v822 = vpop.trf.xlu0
    %v823 = vpop.trf.xlu0
    %v824 = vpop.trf.xlu0
    %v825 = vpop.trf.xlu0
    %v826 = vpop.trf.xlu0
    %v827 = vpop.trf.xlu0
    %v828 = vpop.trf.xlu0
    %v829 = vpop.trf.xlu0
    %v830 = vpop.trf.xlu0
    %v831 = vpop.trf.xlu0
    %v832 = vpop.trf.xlu0
    %v833 = vpop.trf.xlu0
    %v834 = vpop.trf.xlu0
    %835 = vxpose.xlu0.b32.start [1/16] %v791, 128
    %836 = vxpose.xlu0.b32.cont [2/16] %v792, 128
    %837 = vxpose.xlu0.b32.cont [3/16] %v793, 128
    %838 = vxpose.xlu0.b32.cont [4/16] %v794, 128
    %839 = vxpose.xlu0.b32.cont [5/16] 0.0, 128
    %840 = vxpose.xlu0.b32.cont [6/16] 0.0, 128
    %841 = vxpose.xlu0.b32.cont [7/16] 0.0, 128
    %842 = vxpose.xlu0.b32.cont [8/16] 0.0, 128
    %843 = vxpose.xlu0.b32.cont [9/16] 0.0, 128
    %844 = vxpose.xlu0.b32.cont [10/16] 0.0, 128
    %845 = vxpose.xlu0.b32.cont [11/16] 0.0, 128
    %846 = vxpose.xlu0.b32.cont [12/16] 0.0, 128
    %847 = vxpose.xlu0.b32.cont [13/16] 0.0, 128
    %848 = vxpose.xlu0.b32.cont [14/16] 0.0, 128
    %849 = vxpose.xlu0.b32.cont [15/16] 0.0, 128
    %850 = vxpose.xlu0.b32.end [16/16] 0.0, 128
    %v851 = vpop.trf.xlu0
    %v852 = vpop.trf.xlu0
    %v853 = vpop.trf.xlu0
    %v854 = vpop.trf.xlu0
    %v855 = vpop.trf.xlu0
    %v856 = vpop.trf.xlu0
    %v857 = vpop.trf.xlu0
    %v858 = vpop.trf.xlu0
    %v859 = vpop.trf.xlu0
    %v860 = vpop.trf.xlu0
    %v861 = vpop.trf.xlu0
    %v862 = vpop.trf.xlu0
    %v863 = vpop.trf.xlu0
    %v864 = vpop.trf.xlu0
    %v865 = vpop.trf.xlu0
    %v866 = vpop.trf.xlu0
    %867 = vxpose.xlu0.b32.start [1/16] %v795, 128
    %868 = vxpose.xlu0.b32.cont [2/16] %v796, 128
    %869 = vxpose.xlu0.b32.cont [3/16] %v797, 128
    %870 = vxpose.xlu0.b32.cont [4/16] %v798, 128
    %871 = vxpose.xlu0.b32.cont [5/16] 0.0, 128
    %872 = vxpose.xlu0.b32.cont [6/16] 0.0, 128
    %873 = vxpose.xlu0.b32.cont [7/16] 0.0, 128
    %874 = vxpose.xlu0.b32.cont [8/16] 0.0, 128
    %875 = vxpose.xlu0.b32.cont [9/16] 0.0, 128
    %876 = vxpose.xlu0.b32.cont [10/16] 0.0, 128
    %877 = vxpose.xlu0.b32.cont [11/16] 0.0, 128
    %878 = vxpose.xlu0.b32.cont [12/16] 0.0, 128
    %879 = vxpose.xlu0.b32.cont [13/16] 0.0, 128
    %880 = vxpose.xlu0.b32.cont [14/16] 0.0, 128
    %881 = vxpose.xlu0.b32.cont [15/16] 0.0, 128
    %882 = vxpose.xlu0.b32.end [16/16] 0.0, 128
    %v883 = vpop.trf.xlu0
    %v884 = vpop.trf.xlu0
    %v885 = vpop.trf.xlu0
    %v886 = vpop.trf.xlu0
    %v887 = vpop.trf.xlu0
    %v888 = vpop.trf.xlu0
    %v889 = vpop.trf.xlu0
    %v890 = vpop.trf.xlu0
    %v891 = vpop.trf.xlu0
    %v892 = vpop.trf.xlu0
    %v893 = vpop.trf.xlu0
    %v894 = vpop.trf.xlu0
    %v895 = vpop.trf.xlu0
    %v896 = vpop.trf.xlu0
    %v897 = vpop.trf.xlu0
    %v898 = vpop.trf.xlu0
    %899 = vxpose.xlu0.b32.start [1/16] %v799, 128
    %900 = vxpose.xlu0.b32.cont [2/16] %v800, 128
    %901 = vxpose.xlu0.b32.cont [3/16] %v801, 128
    %902 = vxpose.xlu0.b32.cont [4/16] %v802, 128
    %903 = vxpose.xlu0.b32.cont [5/16] 0.0, 128
    %904 = vxpose.xlu0.b32.cont [6/16] 0.0, 128
    %905 = vxpose.xlu0.b32.cont [7/16] 0.0, 128
    %906 = vxpose.xlu0.b32.cont [8/16] 0.0, 128
    %907 = vxpose.xlu0.b32.cont [9/16] 0.0, 128
    %908 = vxpose.xlu0.b32.cont [10/16] 0.0, 128
    %909 = vxpose.xlu0.b32.cont [11/16] 0.0, 128
    %910 = vxpose.xlu0.b32.cont [12/16] 0.0, 128
    %911 = vxpose.xlu0.b32.cont [13/16] 0.0, 128
    %912 = vxpose.xlu0.b32.cont [14/16] 0.0, 128
    %913 = vxpose.xlu0.b32.cont [15/16] 0.0, 128
    %914 = vxpose.xlu0.b32.end [16/16] 0.0, 128
    %v915 = vpop.trf.xlu0
    %v916 = vpop.trf.xlu0
    %v917 = vpop.trf.xlu0
    %v918 = vpop.trf.xlu0
    %v919 = vpop.trf.xlu0
    %v920 = vpop.trf.xlu0
    %v921 = vpop.trf.xlu0
    %v922 = vpop.trf.xlu0
    %v923 = vpop.trf.xlu0
    %v924 = vpop.trf.xlu0
    %v925 = vpop.trf.xlu0
    %v926 = vpop.trf.xlu0
    %v927 = vpop.trf.xlu0
    %v928 = vpop.trf.xlu0
    %v929 = vpop.trf.xlu0
    %v930 = vpop.trf.xlu0
    %v931 = vpack.c.bf16 %v820, %v819
    %v932 = vpack.c.bf16 %v822, %v821
    %v933 = vpack.c.bf16 %v852, %v851
    %v934 = vpack.c.bf16 %v854, %v853
    %v935 = vpack.c.bf16 %v884, %v883
    %v936 = vpack.c.bf16 %v886, %v885
    %v937 = vpack.c.bf16 %v916, %v915
    %v938 = vpack.c.bf16 %v918, %v917
    %939 = vxpose.xlu0.b32.start [1/16] %v511, 128
    %940 = vxpose.xlu0.b32.cont [2/16] %v514, 128
    %941 = vxpose.xlu0.b32.cont [3/16] %v519, 128
    %942 = vxpose.xlu0.b32.cont [4/16] %v522, 128
    %943 = vxpose.xlu0.b32.cont [5/16] 0.0, 128
    %944 = vxpose.xlu0.b32.cont [6/16] 0.0, 128
    %945 = vxpose.xlu0.b32.cont [7/16] 0.0, 128
    %946 = vxpose.xlu0.b32.cont [8/16] 0.0, 128
    %947 = vxpose.xlu0.b32.cont [9/16] 0.0, 128
    %948 = vxpose.xlu0.b32.cont [10/16] 0.0, 128
    %949 = vxpose.xlu0.b32.cont [11/16] 0.0, 128
    %950 = vxpose.xlu0.b32.cont [12/16] 0.0, 128
    %951 = vxpose.xlu0.b32.cont [13/16] 0.0, 128
    %952 = vxpose.xlu0.b32.cont [14/16] 0.0, 128
    %953 = vxpose.xlu0.b32.cont [15/16] 0.0, 128
    %954 = vxpose.xlu0.b32.end [16/16] 0.0, 128
    %v955 = vpop.trf.xlu0
    %v956 = vpop.trf.xlu0
    %v957 = vpop.trf.xlu0
    %v958 = vpop.trf.xlu0
    %v959 = vpop.trf.xlu0
    %v960 = vpop.trf.xlu0
    %v961 = vpop.trf.xlu0
    %v962 = vpop.trf.xlu0
    %v963 = vpop.trf.xlu0
    %v964 = vpop.trf.xlu0
    %v965 = vpop.trf.xlu0
    %v966 = vpop.trf.xlu0
    %v967 = vpop.trf.xlu0
    %v968 = vpop.trf.xlu0
    %v969 = vpop.trf.xlu0
    %v970 = vpop.trf.xlu0
    %971 = vxpose.xlu0.b32.start [1/16] %v955, 128
    %972 = vxpose.xlu0.b32.cont [2/16] %v956, 128
    %973 = vxpose.xlu0.b32.cont [3/16] %v957, 128
    %974 = vxpose.xlu0.b32.cont [4/16] %v958, 128
    %975 = vxpose.xlu0.b32.cont [5/16] 0.0, 128
    %976 = vxpose.xlu0.b32.cont [6/16] 0.0, 128
    %977 = vxpose.xlu0.b32.cont [7/16] 0.0, 128
    %978 = vxpose.xlu0.b32.cont [8/16] 0.0, 128
    %979 = vxpose.xlu0.b32.cont [9/16] 0.0, 128
    %980 = vxpose.xlu0.b32.cont [10/16] 0.0, 128
    %981 = vxpose.xlu0.b32.cont [11/16] 0.0, 128
    %982 = vxpose.xlu0.b32.cont [12/16] 0.0, 128
    %983 = vxpose.xlu0.b32.cont [13/16] 0.0, 128
    %984 = vxpose.xlu0.b32.cont [14/16] 0.0, 128
    %985 = vxpose.xlu0.b32.cont [15/16] 0.0, 128
    %986 = vxpose.xlu0.b32.end [16/16] 0.0, 128
    %v987 = vpop.trf.xlu0
    %v988 = vpop.trf.xlu0
    %v989 = vpop.trf.xlu0
    %v990 = vpop.trf.xlu0
    %v991 = vpop.trf.xlu0
    %v992 = vpop.trf.xlu0
    %v993 = vpop.trf.xlu0
    %v994 = vpop.trf.xlu0
    %v995 = vpop.trf.xlu0
    %v996 = vpop.trf.xlu0
    %v997 = vpop.trf.xlu0
    %v998 = vpop.trf.xlu0
    %v999 = vpop.trf.xlu0
    %v1000 = vpop.trf.xlu0
    %v1001 = vpop.trf.xlu0
    %v1002 = vpop.trf.xlu0
    %1003 = vxpose.xlu0.b32.start [1/16] %v959, 128
    %1004 = vxpose.xlu0.b32.cont [2/16] %v960, 128
    %1005 = vxpose.xlu0.b32.cont [3/16] %v961, 128
    %1006 = vxpose.xlu0.b32.cont [4/16] %v962, 128
    %1007 = vxpose.xlu0.b32.cont [5/16] 0.0, 128
    %1008 = vxpose.xlu0.b32.cont [6/16] 0.0, 128
    %1009 = vxpose.xlu0.b32.cont [7/16] 0.0, 128
    %1010 = vxpose.xlu0.b32.cont [8/16] 0.0, 128
    %1011 = vxpose.xlu0.b32.cont [9/16] 0.0, 128
    %1012 = vxpose.xlu0.b32.cont [10/16] 0.0, 128
    %1013 = vxpose.xlu0.b32.cont [11/16] 0.0, 128
    %1014 = vxpose.xlu0.b32.cont [12/16] 0.0, 128
    %1015 = vxpose.xlu0.b32.cont [13/16] 0.0, 128
    %1016 = vxpose.xlu0.b32.cont [14/16] 0.0, 128
    %1017 = vxpose.xlu0.b32.cont [15/16] 0.0, 128
    %1018 = vxpose.xlu0.b32.end [16/16] 0.0, 128
    %v1019 = vpop.trf.xlu0
    %v1020 = vpop.trf.xlu0
    %v1021 = vpop.trf.xlu0
    %v1022 = vpop.trf.xlu0
    %v1023 = vpop.trf.xlu0
    %v1024 = vpop.trf.xlu0
    %v1025 = vpop.trf.xlu0
    %v1026 = vpop.trf.xlu0
    %v1027 = vpop.trf.xlu0
    %v1028 = vpop.trf.xlu0
    %v1029 = vpop.trf.xlu0
    %v1030 = vpop.trf.xlu0
    %v1031 = vpop.trf.xlu0
    %v1032 = vpop.trf.xlu0
    %v1033 = vpop.trf.xlu0
    %v1034 = vpop.trf.xlu0
    %1035 = vxpose.xlu0.b32.start [1/16] %v963, 128
    %1036 = vxpose.xlu0.b32.cont [2/16] %v964, 128
    %1037 = vxpose.xlu0.b32.cont [3/16] %v965, 128
    %1038 = vxpose.xlu0.b32.cont [4/16] %v966, 128
    %1039 = vxpose.xlu0.b32.cont [5/16] 0.0, 128
    %1040 = vxpose.xlu0.b32.cont [6/16] 0.0, 128
    %1041 = vxpose.xlu0.b32.cont [7/16] 0.0, 128
    %1042 = vxpose.xlu0.b32.cont [8/16] 0.0, 128
    %1043 = vxpose.xlu0.b32.cont [9/16] 0.0, 128
    %1044 = vxpose.xlu0.b32.cont [10/16] 0.0, 128
    %1045 = vxpose.xlu0.b32.cont [11/16] 0.0, 128
    %1046 = vxpose.xlu0.b32.cont [12/16] 0.0, 128
    %1047 = vxpose.xlu0.b32.cont [13/16] 0.0, 128
    %1048 = vxpose.xlu0.b32.cont [14/16] 0.0, 128
    %1049 = vxpose.xlu0.b32.cont [15/16] 0.0, 128
    %1050 = vxpose.xlu0.b32.end [16/16] 0.0, 128
    %v1051 = vpop.trf.xlu0
    %v1052 = vpop.trf.xlu0
    %v1053 = vpop.trf.xlu0
    %v1054 = vpop.trf.xlu0
    %v1055 = vpop.trf.xlu0
    %v1056 = vpop.trf.xlu0
    %v1057 = vpop.trf.xlu0
    %v1058 = vpop.trf.xlu0
    %v1059 = vpop.trf.xlu0
    %v1060 = vpop.trf.xlu0
    %v1061 = vpop.trf.xlu0
    %v1062 = vpop.trf.xlu0
    %v1063 = vpop.trf.xlu0
    %v1064 = vpop.trf.xlu0
    %v1065 = vpop.trf.xlu0
    %v1066 = vpop.trf.xlu0
    %1067 = vxpose.xlu0.b32.start [1/16] %v967, 128
    %1068 = vxpose.xlu0.b32.cont [2/16] %v968, 128
    %1069 = vxpose.xlu0.b32.cont [3/16] %v969, 128
    %1070 = vxpose.xlu0.b32.cont [4/16] %v970, 128
    %1071 = vxpose.xlu0.b32.cont [5/16] 0.0, 128
    %1072 = vxpose.xlu0.b32.cont [6/16] 0.0, 128
    %1073 = vxpose.xlu0.b32.cont [7/16] 0.0, 128
    %1074 = vxpose.xlu0.b32.cont [8/16] 0.0, 128
    %1075 = vxpose.xlu0.b32.cont [9/16] 0.0, 128
    %1076 = vxpose.xlu0.b32.cont [10/16] 0.0, 128
    %1077 = vxpose.xlu0.b32.cont [11/16] 0.0, 128
    %1078 = vxpose.xlu0.b32.cont [12/16] 0.0, 128
    %1079 = vxpose.xlu0.b32.cont [13/16] 0.0, 128
    %1080 = vxpose.xlu0.b32.cont [14/16] 0.0, 128
    %1081 = vxpose.xlu0.b32.cont [15/16] 0.0, 128
    %1082 = vxpose.xlu0.b32.end [16/16] 0.0, 128
    %v1083 = vpop.trf.xlu0
    %v1084 = vpop.trf.xlu0
    %v1085 = vpop.trf.xlu0
    %v1086 = vpop.trf.xlu0
    %v1087 = vpop.trf.xlu0
    %v1088 = vpop.trf.xlu0
    %v1089 = vpop.trf.xlu0
    %v1090 = vpop.trf.xlu0
    %v1091 = vpop.trf.xlu0
    %v1092 = vpop.trf.xlu0
    %v1093 = vpop.trf.xlu0
    %v1094 = vpop.trf.xlu0
    %v1095 = vpop.trf.xlu0
    %v1096 = vpop.trf.xlu0
    %v1097 = vpop.trf.xlu0
    %v1098 = vpop.trf.xlu0
    %v1099 = vpack.c.bf16 %v988, %v987
    %v1100 = vpack.c.bf16 %v990, %v989
    %v1101 = vpack.c.bf16 %v1020, %v1019
    %v1102 = vpack.c.bf16 %v1022, %v1021
    %v1103 = vpack.c.bf16 %v1052, %v1051
    %v1104 = vpack.c.bf16 %v1054, %v1053
    %v1105 = vpack.c.bf16 %v1084, %v1083
    %v1106 = vpack.c.bf16 %v1086, %v1085
    %v1107 = vld [vmem:[#allocation14] sm:$0xff]
    %v1108 = vld [vmem:[#allocation14 + $0x8] sm:$0xff]
    %v1109 = vld [vmem:[#allocation14 + $0x10] sm:$0xff]
    %v1110 = vld [vmem:[#allocation14 + $0x18] sm:$0xff]
    %vm1111 = vcmask 261120
    %v1113 = vsel %vm1111, %v763, 0
    %v1116 = vsel %vm1111, %v764, 0
    %v1119 = vsel %vm1111, %v931, 0
    %v1122 = vsel %vm1111, %v932, 0
    %1124 = vmatprep.subr.bf16.mxu0 0
    %1125 = vmatpush1.bf16.xpose.msra.mxu0 %v1119
    %1126 = vmatprep.subr.bf16.mxu0 0
    %1127 = vmatpush1.bf16.xpose.msra.mxu0 %v1122
    %1128 = vmatprep.subr.bf16.mxu0 0
    %1129 = vmatpush1.bf16.xpose.msra.mxu0 0
    %1130 = vmatprep.subr.bf16.mxu0 0
    %1131 = vmatpush1.bf16.xpose.msra.mxu0 0
    %1132 = vmatprep.subr.bf16.mxu0 0
    %1133 = vmatpush1.bf16.xpose.msra.mxu0 0
    %1134 = vmatprep.subr.bf16.mxu0 0
    %1135 = vmatpush1.bf16.xpose.msra.mxu0 0
    %1136 = vmatprep.subr.bf16.mxu0 0
    %1137 = vmatpush1.bf16.xpose.msra.mxu0 0
    %1138 = vmatprep.subr.bf16.mxu0 0
    %1139 = vmatpush1.bf16.xpose.msra.mxu0 0
    %1140 = vmatprep.subr.bf16.mxu0 0
    %1141 = vmatpush1.bf16.xpose.msra.mxu0 0
    %1142 = vmatprep.subr.bf16.mxu0 0
    %1143 = vmatpush1.bf16.xpose.msra.mxu0 0
    %1144 = vmatprep.subr.bf16.mxu0 0
    %1145 = vmatpush1.bf16.xpose.msra.mxu0 0
    %1146 = vmatprep.subr.bf16.mxu0 0
    %1147 = vmatpush1.bf16.xpose.msra.mxu0 0
    %1148 = vmatprep.subr.bf16.mxu0 0
    %1149 = vmatpush1.bf16.xpose.msra.mxu0 0
    %1150 = vmatprep.subr.bf16.mxu0 0
    %1151 = vmatpush1.bf16.xpose.msra.mxu0 0
    %1152 = vmatprep.subr.bf16.mxu0 0
    %1153 = vmatpush1.bf16.xpose.msra.mxu0 0
    %1154 = vmatprep.subr.bf16.mxu0 0
    %1155 = vmatpush1.bf16.xpose.msra.mxu0 0
    %1156 = vmatprep.mubr.bf16.mxu0 0
    %1157 = vmatmul.mubr.bf16.gmra.mrb[0].mxu0 %v1113
    %v1158 = vpop.f32.mrb[0].mxu0
    %v1159 = vadd.f32 %v1107, %v1158
    %v1160 = vpop.f32.mrb[0].mxu0
    %v1161 = vpop.f32.mrb[0].mxu0
    %v1162 = vadd.f32 %v1108, %v1161
    %v1163 = vpop.f32.mrb[0].mxu0
    %1164 = vmatprep.mubr.bf16.mxu0 0
    %1165 = vmatmul.mubr.bf16.gmra.mrb[0].mxu0 %v1116
    %v1166 = vpop.f32.mrb[0].mxu0
    %v1167 = vadd.f32 %v1109, %v1166
    %v1168 = vpop.f32.mrb[0].mxu0
    %v1169 = vpop.f32.mrb[0].mxu0
    %v1170 = vadd.f32 %v1110, %v1169
    %v1171 = vpop.f32.mrb[0].mxu0
    %1172 = vdwg.mxu0
    %v1174 = vsel %vm1111, %v765, 0
    %v1177 = vsel %vm1111, %v766, 0
    %v1180 = vsel %vm1111, %v933, 0
    %v1183 = vsel %vm1111, %v934, 0
    %1185 = vmatprep.subr.bf16.mxu0 0
    %1186 = vmatpush1.bf16.xpose.msra.mxu0 %v1180
    %1187 = vmatprep.subr.bf16.mxu0 0
    %1188 = vmatpush1.bf16.xpose.msra.mxu0 %v1183
    %1189 = vmatprep.subr.bf16.mxu0 0
    %1190 = vmatpush1.bf16.xpose.msra.mxu0 0
    %1191 = vmatprep.subr.bf16.mxu0 0
    %1192 = vmatpush1.bf16.xpose.msra.mxu0 0
    %1193 = vmatprep.subr.bf16.mxu0 0
    %1194 = vmatpush1.bf16.xpose.msra.mxu0 0
    %1195 = vmatprep.subr.bf16.mxu0 0
    %1196 = vmatpush1.bf16.xpose.msra.mxu0 0
    %1197 = vmatprep.subr.bf16.mxu0 0
    %1198 = vmatpush1.bf16.xpose.msra.mxu0 0
    %1199 = vmatprep.subr.bf16.mxu0 0
    %1200 = vmatpush1.bf16.xpose.msra.mxu0 0
    %1201 = vmatprep.subr.bf16.mxu0 0
    %1202 = vmatpush1.bf16.xpose.msra.mxu0 0
    %1203 = vmatprep.subr.bf16.mxu0 0
    %1204 = vmatpush1.bf16.xpose.msra.mxu0 0
    %1205 = vmatprep.subr.bf16.mxu0 0
    %1206 = vmatpush1.bf16.xpose.msra.mxu0 0
    %1207 = vmatprep.subr.bf16.mxu0 0
    %1208 = vmatpush1.bf16.xpose.msra.mxu0 0
    %1209 = vmatprep.subr.bf16.mxu0 0
    %1210 = vmatpush1.bf16.xpose.msra.mxu0 0
    %1211 = vmatprep.subr.bf16.mxu0 0
    %1212 = vmatpush1.bf16.xpose.msra.mxu0 0
    %1213 = vmatprep.subr.bf16.mxu0 0
    %1214 = vmatpush1.bf16.xpose.msra.mxu0 0
    %1215 = vmatprep.subr.bf16.mxu0 0
    %1216 = vmatpush1.bf16.xpose.msra.mxu0 0
    %1217 = vmatprep.mubr.bf16.mxu0 0
    %1218 = vmatmul.mubr.bf16.gmra.mrb[0].mxu0 %v1174
    %v1219 = vpop.f32.mrb[0].mxu0
    %v1220 = vadd.f32 %v1107, %v1219
    %v1221 = vpop.f32.mrb[0].mxu0
    %v1222 = vpop.f32.mrb[0].mxu0
    %v1223 = vadd.f32 %v1108, %v1222
    %v1224 = vpop.f32.mrb[0].mxu0
    %1225 = vmatprep.mubr.bf16.mxu0 0
    %1226 = vmatmul.mubr.bf16.gmra.mrb[0].mxu0 %v1177
    %v1227 = vpop.f32.mrb[0].mxu0
    %v1228 = vadd.f32 %v1109, %v1227
    %v1229 = vpop.f32.mrb[0].mxu0
    %v1230 = vpop.f32.mrb[0].mxu0
    %v1231 = vadd.f32 %v1110, %v1230
    %v1232 = vpop.f32.mrb[0].mxu0
    %1233 = vdwg.mxu0
    %v1235 = vsel %vm1111, %v767, 0
    %v1238 = vsel %vm1111, %v768, 0
    %v1241 = vsel %vm1111, %v935, 0
    %v1244 = vsel %vm1111, %v936, 0
    %1246 = vmatprep.subr.bf16.mxu0 0
    %1247 = vmatpush1.bf16.xpose.msra.mxu0 %v1241
    %1248 = vmatprep.subr.bf16.mxu0 0
    %1249 = vmatpush1.bf16.xpose.msra.mxu0 %v1244
    %1250 = vmatprep.subr.bf16.mxu0 0
    %1251 = vmatpush1.bf16.xpose.msra.mxu0 0
    %1252 = vmatprep.subr.bf16.mxu0 0
    %1253 = vmatpush1.bf16.xpose.msra.mxu0 0
    %1254 = vmatprep.subr.bf16.mxu0 0
    %1255 = vmatpush1.bf16.xpose.msra.mxu0 0
    %1256 = vmatprep.subr.bf16.mxu0 0
    %1257 = vmatpush1.bf16.xpose.msra.mxu0 0
    %1258 = vmatprep.subr.bf16.mxu0 0
    %1259 = vmatpush1.bf16.xpose.msra.mxu0 0
    %1260 = vmatprep.subr.bf16.mxu0 0
    %1261 = vmatpush1.bf16.xpose.msra.mxu0 0
    %1262 = vmatprep.subr.bf16.mxu0 0
    %1263 = vmatpush1.bf16.xpose.msra.mxu0 0
    %1264 = vmatprep.subr.bf16.mxu0 0
    %1265 = vmatpush1.bf16.xpose.msra.mxu0 0
    %1266 = vmatprep.subr.bf16.mxu0 0
    %1267 = vmatpush1.bf16.xpose.msra.mxu0 0
    %1268 = vmatprep.subr.bf16.mxu0 0
    %1269 = vmatpush1.bf16.xpose.msra.mxu0 0
    %1270 = vmatprep.subr.bf16.mxu0 0
    %1271 = vmatpush1.bf16.xpose.msra.mxu0 0
    %1272 = vmatprep.subr.bf16.mxu0 0
    %1273 = vmatpush1.bf16.xpose.msra.mxu0 0
    %1274 = vmatprep.subr.bf16.mxu0 0
    %1275 = vmatpush1.bf16.xpose.msra.mxu0 0
    %1276 = vmatprep.subr.bf16.mxu0 0
    %1277 = vmatpush1.bf16.xpose.msra.mxu0 0
    %1278 = vmatprep.mubr.bf16.mxu0 0
    %1279 = vmatmul.mubr.bf16.gmra.mrb[0].mxu0 %v1235
    %v1280 = vpop.f32.mrb[0].mxu0
    %v1281 = vadd.f32 %v1107, %v1280
    %v1282 = vpop.f32.mrb[0].mxu0
    %v1283 = vpop.f32.mrb[0].mxu0
    %v1284 = vadd.f32 %v1108, %v1283
    %v1285 = vpop.f32.mrb[0].mxu0
    %1286 = vmatprep.mubr.bf16.mxu0 0
    %1287 = vmatmul.mubr.bf16.gmra.mrb[0].mxu0 %v1238
    %v1288 = vpop.f32.mrb[0].mxu0
    %v1289 = vadd.f32 %v1109, %v1288
    %v1290 = vpop.f32.mrb[0].mxu0
    %v1291 = vpop.f32.mrb[0].mxu0
    %v1292 = vadd.f32 %v1110, %v1291
    %v1293 = vpop.f32.mrb[0].mxu0
    %1294 = vdwg.mxu0
    %v1296 = vsel %vm1111, %v769, 0
    %v1299 = vsel %vm1111, %v770, 0
    %v1302 = vsel %vm1111, %v937, 0
    %v1305 = vsel %vm1111, %v938, 0
    %1307 = vmatprep.subr.bf16.mxu0 0
    %1308 = vmatpush1.bf16.xpose.msra.mxu0 %v1302
    %1309 = vmatprep.subr.bf16.mxu0 0
    %1310 = vmatpush1.bf16.xpose.msra.mxu0 %v1305
    %1311 = vmatprep.subr.bf16.mxu0 0
    %1312 = vmatpush1.bf16.xpose.msra.mxu0 0
    %1313 = vmatprep.subr.bf16.mxu0 0
    %1314 = vmatpush1.bf16.xpose.msra.mxu0 0
    %1315 = vmatprep.subr.bf16.mxu0 0
    %1316 = vmatpush1.bf16.xpose.msra.mxu0 0
    %1317 = vmatprep.subr.bf16.mxu0 0
    %1318 = vmatpush1.bf16.xpose.msra.mxu0 0
    %1319 = vmatprep.subr.bf16.mxu0 0
    %1320 = vmatpush1.bf16.xpose.msra.mxu0 0
    %1321 = vmatprep.subr.bf16.mxu0 0
    %1322 = vmatpush1.bf16.xpose.msra.mxu0 0
    %1323 = vmatprep.subr.bf16.mxu0 0
    %1324 = vmatpush1.bf16.xpose.msra.mxu0 0
    %1325 = vmatprep.subr.bf16.mxu0 0
    %1326 = vmatpush1.bf16.xpose.msra.mxu0 0
    %1327 = vmatprep.subr.bf16.mxu0 0
    %1328 = vmatpush1.bf16.xpose.msra.mxu0 0
    %1329 = vmatprep.subr.bf16.mxu0 0
    %1330 = vmatpush1.bf16.xpose.msra.mxu0 0
    %1331 = vmatprep.subr.bf16.mxu0 0
    %1332 = vmatpush1.bf16.xpose.msra.mxu0 0
    %1333 = vmatprep.subr.bf16.mxu0 0
    %1334 = vmatpush1.bf16.xpose.msra.mxu0 0
    %1335 = vmatprep.subr.bf16.mxu0 0
    %1336 = vmatpush1.bf16.xpose.msra.mxu0 0
    %1337 = vmatprep.subr.bf16.mxu0 0
    %1338 = vmatpush1.bf16.xpose.msra.mxu0 0
    %1339 = vmatprep.mubr.bf16.mxu0 0
    %1340 = vmatmul.mubr.bf16.gmra.mrb[0].mxu0 %v1296
    %v1341 = vpop.f32.mrb[0].mxu0
    %v1342 = vadd.f32 %v1107, %v1341
    %v1343 = vpop.f32.mrb[0].mxu0
    %v1344 = vpop.f32.mrb[0].mxu0
    %v1345 = vadd.f32 %v1108, %v1344
    %v1346 = vpop.f32.mrb[0].mxu0
    %1347 = vmatprep.mubr.bf16.mxu0 0
    %1348 = vmatmul.mubr.bf16.gmra.mrb[0].mxu0 %v1299
    %v1349 = vpop.f32.mrb[0].mxu0
    %v1350 = vadd.f32 %v1109, %v1349
    %v1351 = vpop.f32.mrb[0].mxu0
    %v1352 = vpop.f32.mrb[0].mxu0
    %v1353 = vadd.f32 %v1110, %v1352
    %v1354 = vpop.f32.mrb[0].mxu0
    %1355 = vdwg.mxu0
    %v1356 = vsel %vm1111, %v1159, -inf
    %1357 = vmax.xlane.f32.xlu0 %v1356
    %v1358 = vpop.xlane.xlu0 %1357
    %v1359 = vsel %vm1111, %v1162, -inf
    %1360 = vmax.xlane.f32.xlu0 %v1359
    %v1361 = vpop.xlane.xlu0 %1360
    %v1362 = vsel %vm1111, %v1167, -inf
    %1363 = vmax.xlane.f32.xlu0 %v1362
    %v1364 = vpop.xlane.xlu0 %1363
    %v1365 = vsel %vm1111, %v1170, -inf
    %1366 = vmax.xlane.f32.xlu0 %v1365
    %v1367 = vpop.xlane.xlu0 %1366
    %v1368 = vsel %vm1111, %v1220, -inf
    %1369 = vmax.xlane.f32.xlu0 %v1368
    %v1370 = vpop.xlane.xlu0 %1369
    %v1371 = vsel %vm1111, %v1223, -inf
    %1372 = vmax.xlane.f32.xlu0 %v1371
    %v1373 = vpop.xlane.xlu0 %1372
    %v1374 = vsel %vm1111, %v1228, -inf
    %1375 = vmax.xlane.f32.xlu0 %v1374
    %v1376 = vpop.xlane.xlu0 %1375
    %v1377 = vsel %vm1111, %v1231, -inf
    %1378 = vmax.xlane.f32.xlu0 %v1377
    %v1379 = vpop.xlane.xlu0 %1378
    %v1380 = vsel %vm1111, %v1281, -inf
    %1381 = vmax.xlane.f32.xlu0 %v1380
    %v1382 = vpop.xlane.xlu0 %1381
    %v1383 = vsel %vm1111, %v1284, -inf
    %1384 = vmax.xlane.f32.xlu0 %v1383
    %v1385 = vpop.xlane.xlu0 %1384
    %v1386 = vsel %vm1111, %v1289, -inf
    %1387 = vmax.xlane.f32.xlu0 %v1386
    %v1388 = vpop.xlane.xlu0 %1387
    %v1389 = vsel %vm1111, %v1292, -inf
    %1390 = vmax.xlane.f32.xlu0 %v1389
    %v1391 = vpop.xlane.xlu0 %1390
    %v1392 = vsel %vm1111, %v1342, -inf
    %1393 = vmax.xlane.f32.xlu0 %v1392
    %v1394 = vpop.xlane.xlu0 %1393
    %v1395 = vsel %vm1111, %v1345, -inf
    %1396 = vmax.xlane.f32.xlu0 %v1395
    %v1397 = vpop.xlane.xlu0 %1396
    %v1398 = vsel %vm1111, %v1350, -inf
    %1399 = vmax.xlane.f32.xlu0 %v1398
    %v1400 = vpop.xlane.xlu0 %1399
    %v1401 = vsel %vm1111, %v1353, -inf
    %1402 = vmax.xlane.f32.xlu0 %v1401
    %v1403 = vpop.xlane.xlu0 %1402
    %v1404 = vsub.f32 %v1159, %v1358
    %v1405 = vsub.f32 %v1162, %v1361
    %v1406 = vsub.f32 %v1167, %v1364
    %v1407 = vsub.f32 %v1170, %v1367
    %v1408 = vsub.f32 %v1220, %v1370
    %v1409 = vsub.f32 %v1223, %v1373
    %v1410 = vsub.f32 %v1228, %v1376
    %v1411 = vsub.f32 %v1231, %v1379
    %v1412 = vsub.f32 %v1281, %v1382
    %v1413 = vsub.f32 %v1284, %v1385
    %v1414 = vsub.f32 %v1289, %v1388
    %v1415 = vsub.f32 %v1292, %v1391
    %v1416 = vsub.f32 %v1342, %v1394
    %v1417 = vsub.f32 %v1345, %v1397
    %v1418 = vsub.f32 %v1350, %v1400
    %v1419 = vsub.f32 %v1353, %v1403
    %v1420 = vmul.f32 %v1404, 1.442695
    %v1421 = vpow.pop %v1420
    %v1422 = vmul.f32 %v1405, 1.442695
    %v1423 = vpow.pop %v1422
    %v1424 = vmul.f32 %v1406, 1.442695
    %v1425 = vpow.pop %v1424
    %v1426 = vmul.f32 %v1407, 1.442695
    %v1427 = vpow.pop %v1426
    %v1428 = vmul.f32 %v1408, 1.442695
    %v1429 = vpow.pop %v1428
    %v1430 = vmul.f32 %v1409, 1.442695
    %v1431 = vpow.pop %v1430
    %v1432 = vmul.f32 %v1410, 1.442695
    %v1433 = vpow.pop %v1432
    %v1434 = vmul.f32 %v1411, 1.442695
    %v1435 = vpow.pop %v1434
    %v1436 = vmul.f32 %v1412, 1.442695
    %v1437 = vpow.pop %v1436
    %v1438 = vmul.f32 %v1413, 1.442695
    %v1439 = vpow.pop %v1438
    %v1440 = vmul.f32 %v1414, 1.442695
    %v1441 = vpow.pop %v1440
    %v1442 = vmul.f32 %v1415, 1.442695
    %v1443 = vpow.pop %v1442
    %v1444 = vmul.f32 %v1416, 1.442695
    %v1445 = vpow.pop %v1444
    %v1446 = vmul.f32 %v1417, 1.442695
    %v1447 = vpow.pop %v1446
    %v1448 = vmul.f32 %v1418, 1.442695
    %v1449 = vpow.pop %v1448
    %v1450 = vmul.f32 %v1419, 1.442695
    %v1451 = vpow.pop %v1450
    %v1452 = vsel %vm1111, %v1421, 0.0
    %1453 = vadd.xlane.f32.xlu0 %v1452
    %v1454 = vpop.xlane.xlu0 %1453
    %v1455 = vsel %vm1111, %v1423, 0.0
    %1456 = vadd.xlane.f32.xlu0 %v1455
    %v1457 = vpop.xlane.xlu0 %1456
    %v1458 = vsel %vm1111, %v1425, 0.0
    %1459 = vadd.xlane.f32.xlu0 %v1458
    %v1460 = vpop.xlane.xlu0 %1459
    %v1461 = vsel %vm1111, %v1427, 0.0
    %1462 = vadd.xlane.f32.xlu0 %v1461
    %v1463 = vpop.xlane.xlu0 %1462
    %v1464 = vsel %vm1111, %v1429, 0.0
    %1465 = vadd.xlane.f32.xlu0 %v1464
    %v1466 = vpop.xlane.xlu0 %1465
    %v1467 = vsel %vm1111, %v1431, 0.0
    %1468 = vadd.xlane.f32.xlu0 %v1467
    %v1469 = vpop.xlane.xlu0 %1468
    %v1470 = vsel %vm1111, %v1433, 0.0
    %1471 = vadd.xlane.f32.xlu0 %v1470
    %v1472 = vpop.xlane.xlu0 %1471
    %v1473 = vsel %vm1111, %v1435, 0.0
    %1474 = vadd.xlane.f32.xlu0 %v1473
    %v1475 = vpop.xlane.xlu0 %1474
    %v1476 = vsel %vm1111, %v1437, 0.0
    %1477 = vadd.xlane.f32.xlu0 %v1476
    %v1478 = vpop.xlane.xlu0 %1477
    %v1479 = vsel %vm1111, %v1439, 0.0
    %1480 = vadd.xlane.f32.xlu0 %v1479
    %v1481 = vpop.xlane.xlu0 %1480
    %v1482 = vsel %vm1111, %v1441, 0.0
    %1483 = vadd.xlane.f32.xlu0 %v1482
    %v1484 = vpop.xlane.xlu0 %1483
    %v1485 = vsel %vm1111, %v1443, 0.0
    %1486 = vadd.xlane.f32.xlu0 %v1485
    %v1487 = vpop.xlane.xlu0 %1486
    %v1488 = vsel %vm1111, %v1445, 0.0
    %1489 = vadd.xlane.f32.xlu0 %v1488
    %v1490 = vpop.xlane.xlu0 %1489
    %v1491 = vsel %vm1111, %v1447, 0.0
    %1492 = vadd.xlane.f32.xlu0 %v1491
    %v1493 = vpop.xlane.xlu0 %1492
    %v1494 = vsel %vm1111, %v1449, 0.0
    %1495 = vadd.xlane.f32.xlu0 %v1494
    %v1496 = vpop.xlane.xlu0 %1495
    %v1497 = vsel %vm1111, %v1451, 0.0
    %1498 = vadd.xlane.f32.xlu0 %v1497
    %v1499 = vpop.xlane.xlu0 %1498
    %v1500 = vrcp.pop %v1454
    %v1501 = vrcp.pop %v1457
    %v1502 = vrcp.pop %v1460
    %v1503 = vrcp.pop %v1463
    %v1504 = vrcp.pop %v1466
    %v1505 = vrcp.pop %v1469
    %v1506 = vrcp.pop %v1472
    %v1507 = vrcp.pop %v1475
    %v1508 = vrcp.pop %v1478
    %v1509 = vrcp.pop %v1481
    %v1510 = vrcp.pop %v1484
    %v1511 = vrcp.pop %v1487
    %v1512 = vrcp.pop %v1490
    %v1513 = vrcp.pop %v1493
    %v1514 = vrcp.pop %v1496
    %v1515 = vrcp.pop %v1499
    %v1516 = vmul.f32 %v1421, %v1500
    %v1517 = vmul.f32 %v1423, %v1501
    %v1518 = vmul.f32 %v1425, %v1502
    %v1519 = vmul.f32 %v1427, %v1503
    %v1520 = vmul.f32 %v1429, %v1504
    %v1521 = vmul.f32 %v1431, %v1505
    %v1522 = vmul.f32 %v1433, %v1506
    %v1523 = vmul.f32 %v1435, %v1507
    %v1524 = vmul.f32 %v1437, %v1508
    %v1525 = vmul.f32 %v1439, %v1509
    %v1526 = vmul.f32 %v1441, %v1510
    %v1527 = vmul.f32 %v1443, %v1511
    %v1528 = vmul.f32 %v1445, %v1512
    %v1529 = vmul.f32 %v1447, %v1513
    %v1530 = vmul.f32 %v1449, %v1514
    %v1531 = vmul.f32 %v1451, %v1515
    %v1532 = vpack.c.bf16 %v1517, %v1516
    %v1533 = vpack.c.bf16 %v1519, %v1518
    %v1534 = vpack.c.bf16 %v1521, %v1520
    %v1535 = vpack.c.bf16 %v1523, %v1522
    %v1536 = vpack.c.bf16 %v1525, %v1524
    %v1537 = vpack.c.bf16 %v1527, %v1526
    %v1538 = vpack.c.bf16 %v1529, %v1528
    %v1539 = vpack.c.bf16 %v1531, %v1530
    %v1541 = vsel %vm1111, %v1532, 0
    %v1544 = vsel %vm1111, %v1533, 0
    %1546 = vmatprep.subr.bf16.mxu0 0
    %1547 = vmatpush1.bf16.msra.mxu0 %v1099
    %1548 = vmatprep.subr.bf16.mxu0 0
    %1549 = vmatpush1.bf16.msra.mxu0 %v1100
    %1550 = vmatprep.subr.bf16.mxu0 0
    %1551 = vmatpush1.bf16.msra.mxu0 0
    %1552 = vmatprep.subr.bf16.mxu0 0
    %1553 = vmatpush1.bf16.msra.mxu0 0
    %1554 = vmatprep.subr.bf16.mxu0 0
    %1555 = vmatpush1.bf16.msra.mxu0 0
    %1556 = vmatprep.subr.bf16.mxu0 0
    %1557 = vmatpush1.bf16.msra.mxu0 0
    %1558 = vmatprep.subr.bf16.mxu0 0
    %1559 = vmatpush1.bf16.msra.mxu0 0
    %1560 = vmatprep.subr.bf16.mxu0 0
    %1561 = vmatpush1.bf16.msra.mxu0 0
    %1562 = vmatprep.subr.bf16.mxu0 0
    %1563 = vmatpush1.bf16.msra.mxu0 0
    %1564 = vmatprep.subr.bf16.mxu0 0
    %1565 = vmatpush1.bf16.msra.mxu0 0
    %1566 = vmatprep.subr.bf16.mxu0 0
    %1567 = vmatpush1.bf16.msra.mxu0 0
    %1568 = vmatprep.subr.bf16.mxu0 0
    %1569 = vmatpush1.bf16.msra.mxu0 0
    %1570 = vmatprep.subr.bf16.mxu0 0
    %1571 = vmatpush1.bf16.msra.mxu0 0
    %1572 = vmatprep.subr.bf16.mxu0 0
    %1573 = vmatpush1.bf16.msra.mxu0 0
    %1574 = vmatprep.subr.bf16.mxu0 0
    %1575 = vmatpush1.bf16.msra.mxu0 0
    %1576 = vmatprep.subr.bf16.mxu0 0
    %1577 = vmatpush1.bf16.msra.mxu0 0
    %1578 = vmatprep.mubr.bf16.mxu0 0
    %1579 = vmatmul.mubr.bf16.gmra.mrb[0].mxu0 %v1541
    %v1580 = vpop.f32.mrb[0].mxu0
    %v1581 = vadd.f32 0.0, %v1580
    %v1582 = vpop.f32.mrb[0].mxu0
    %v1583 = vpop.f32.mrb[0].mxu0
    %v1584 = vadd.f32 0.0, %v1583
    %v1585 = vpop.f32.mrb[0].mxu0
    %1586 = vmatprep.mubr.bf16.mxu0 0
    %1587 = vmatmul.mubr.bf16.gmra.mrb[0].mxu0 %v1544
    %v1588 = vpop.f32.mrb[0].mxu0
    %v1589 = vadd.f32 0.0, %v1588
    %v1590 = vpop.f32.mrb[0].mxu0
    %v1591 = vpop.f32.mrb[0].mxu0
    %v1592 = vadd.f32 0.0, %v1591
    %v1593 = vpop.f32.mrb[0].mxu0
    %1594 = vdwg.mxu0
    %v1596 = vsel %vm1111, %v1534, 0
    %v1599 = vsel %vm1111, %v1535, 0
    %1601 = vmatprep.subr.bf16.mxu0 0
    %1602 = vmatpush1.bf16.msra.mxu0 %v1101
    %1603 = vmatprep.subr.bf16.mxu0 0
    %1604 = vmatpush1.bf16.msra.mxu0 %v1102
    %1605 = vmatprep.subr.bf16.mxu0 0
    %1606 = vmatpush1.bf16.msra.mxu0 0
    %1607 = vmatprep.subr.bf16.mxu0 0
    %1608 = vmatpush1.bf16.msra.mxu0 0
    %1609 = vmatprep.subr.bf16.mxu0 0
    %1610 = vmatpush1.bf16.msra.mxu0 0
    %1611 = vmatprep.subr.bf16.mxu0 0
    %1612 = vmatpush1.bf16.msra.mxu0 0
    %1613 = vmatprep.subr.bf16.mxu0 0
    %1614 = vmatpush1.bf16.msra.mxu0 0
    %1615 = vmatprep.subr.bf16.mxu0 0
    %1616 = vmatpush1.bf16.msra.mxu0 0
    %1617 = vmatprep.subr.bf16.mxu0 0
    %1618 = vmatpush1.bf16.msra.mxu0 0
    %1619 = vmatprep.subr.bf16.mxu0 0
    %1620 = vmatpush1.bf16.msra.mxu0 0
    %1621 = vmatprep.subr.bf16.mxu0 0
    %1622 = vmatpush1.bf16.msra.mxu0 0
    %1623 = vmatprep.subr.bf16.mxu0 0
    %1624 = vmatpush1.bf16.msra.mxu0 0
    %1625 = vmatprep.subr.bf16.mxu0 0
    %1626 = vmatpush1.bf16.msra.mxu0 0
    %1627 = vmatprep.subr.bf16.mxu0 0
    %1628 = vmatpush1.bf16.msra.mxu0 0
    %1629 = vmatprep.subr.bf16.mxu0 0
    %1630 = vmatpush1.bf16.msra.mxu0 0
    %1631 = vmatprep.subr.bf16.mxu0 0
    %1632 = vmatpush1.bf16.msra.mxu0 0
    %1633 = vmatprep.mubr.bf16.mxu0 0
    %1634 = vmatmul.mubr.bf16.gmra.mrb[0].mxu0 %v1596
    %v1635 = vpop.f32.mrb[0].mxu0
    %v1636 = vadd.f32 0.0, %v1635
    %v1637 = vpop.f32.mrb[0].mxu0
    %v1638 = vpop.f32.mrb[0].mxu0
    %v1639 = vadd.f32 0.0, %v1638
    %v1640 = vpop.f32.mrb[0].mxu0
    %1641 = vmatprep.mubr.bf16.mxu0 0
    %1642 = vmatmul.mubr.bf16.gmra.mrb[0].mxu0 %v1599
    %v1643 = vpop.f32.mrb[0].mxu0
    %v1644 = vadd.f32 0.0, %v1643
    %v1645 = vpop.f32.mrb[0].mxu0
    %v1646 = vpop.f32.mrb[0].mxu0
    %v1647 = vadd.f32 0.0, %v1646
    %v1648 = vpop.f32.mrb[0].mxu0
    %1649 = vdwg.mxu0
    %v1651 = vsel %vm1111, %v1536, 0
    %v1654 = vsel %vm1111, %v1537, 0
    %1656 = vmatprep.subr.bf16.mxu0 0
    %1657 = vmatpush1.bf16.msra.mxu0 %v1103
    %1658 = vmatprep.subr.bf16.mxu0 0
    %1659 = vmatpush1.bf16.msra.mxu0 %v1104
    %1660 = vmatprep.subr.bf16.mxu0 0
    %1661 = vmatpush1.bf16.msra.mxu0 0
    %1662 = vmatprep.subr.bf16.mxu0 0
    %1663 = vmatpush1.bf16.msra.mxu0 0
    %1664 = vmatprep.subr.bf16.mxu0 0
    %1665 = vmatpush1.bf16.msra.mxu0 0
    %1666 = vmatprep.subr.bf16.mxu0 0
    %1667 = vmatpush1.bf16.msra.mxu0 0
    %1668 = vmatprep.subr.bf16.mxu0 0
    %1669 = vmatpush1.bf16.msra.mxu0 0
    %1670 = vmatprep.subr.bf16.mxu0 0
    %1671 = vmatpush1.bf16.msra.mxu0 0
    %1672 = vmatprep.subr.bf16.mxu0 0
    %1673 = vmatpush1.bf16.msra.mxu0 0
    %1674 = vmatprep.subr.bf16.mxu0 0
    %1675 = vmatpush1.bf16.msra.mxu0 0
    %1676 = vmatprep.subr.bf16.mxu0 0
    %1677 = vmatpush1.bf16.msra.mxu0 0
    %1678 = vmatprep.subr.bf16.mxu0 0
    %1679 = vmatpush1.bf16.msra.mxu0 0
    %1680 = vmatprep.subr.bf16.mxu0 0
    %1681 = vmatpush1.bf16.msra.mxu0 0
    %1682 = vmatprep.subr.bf16.mxu0 0
    %1683 = vmatpush1.bf16.msra.mxu0 0
    %1684 = vmatprep.subr.bf16.mxu0 0
    %1685 = vmatpush1.bf16.msra.mxu0 0
    %1686 = vmatprep.subr.bf16.mxu0 0
    %1687 = vmatpush1.bf16.msra.mxu0 0
    %1688 = vmatprep.mubr.bf16.mxu0 0
    %1689 = vmatmul.mubr.bf16.gmra.mrb[0].mxu0 %v1651
    %v1690 = vpop.f32.mrb[0].mxu0
    %v1691 = vadd.f32 0.0, %v1690
    %v1692 = vpop.f32.mrb[0].mxu0
    %v1693 = vpop.f32.mrb[0].mxu0
    %v1694 = vadd.f32 0.0, %v1693
    %v1695 = vpop.f32.mrb[0].mxu0
    %1696 = vmatprep.mubr.bf16.mxu0 0
    %1697 = vmatmul.mubr.bf16.gmra.mrb[0].mxu0 %v1654
    %v1698 = vpop.f32.mrb[0].mxu0
    %v1699 = vadd.f32 0.0, %v1698
    %v1700 = vpop.f32.mrb[0].mxu0
    %v1701 = vpop.f32.mrb[0].mxu0
    %v1702 = vadd.f32 0.0, %v1701
    %v1703 = vpop.f32.mrb[0].mxu0
    %1704 = vdwg.mxu0
    %v1706 = vsel %vm1111, %v1538, 0
    %v1709 = vsel %vm1111, %v1539, 0
    %1711 = vmatprep.subr.bf16.mxu0 0
    %1712 = vmatpush1.bf16.msra.mxu0 %v1105
    %1713 = vmatprep.subr.bf16.mxu0 0
    %1714 = vmatpush1.bf16.msra.mxu0 %v1106
    %1715 = vmatprep.subr.bf16.mxu0 0
    %1716 = vmatpush1.bf16.msra.mxu0 0
    %1717 = vmatprep.subr.bf16.mxu0 0
    %1718 = vmatpush1.bf16.msra.mxu0 0
    %1719 = vmatprep.subr.bf16.mxu0 0
    %1720 = vmatpush1.bf16.msra.mxu0 0
    %1721 = vmatprep.subr.bf16.mxu0 0
    %1722 = vmatpush1.bf16.msra.mxu0 0
    %1723 = vmatprep.subr.bf16.mxu0 0
    %1724 = vmatpush1.bf16.msra.mxu0 0
    %1725 = vmatprep.subr.bf16.mxu0 0
    %1726 = vmatpush1.bf16.msra.mxu0 0
    %1727 = vmatprep.subr.bf16.mxu0 0
    %1728 = vmatpush1.bf16.msra.mxu0 0
    %1729 = vmatprep.subr.bf16.mxu0 0
    %1730 = vmatpush1.bf16.msra.mxu0 0
    %1731 = vmatprep.subr.bf16.mxu0 0
    %1732 = vmatpush1.bf16.msra.mxu0 0
    %1733 = vmatprep.subr.bf16.mxu0 0
    %1734 = vmatpush1.bf16.msra.mxu0 0
    %1735 = vmatprep.subr.bf16.mxu0 0
    %1736 = vmatpush1.bf16.msra.mxu0 0
    %1737 = vmatprep.subr.bf16.mxu0 0
    %1738 = vmatpush1.bf16.msra.mxu0 0
    %1739 = vmatprep.subr.bf16.mxu0 0
    %1740 = vmatpush1.bf16.msra.mxu0 0
    %1741 = vmatprep.subr.bf16.mxu0 0
    %1742 = vmatpush1.bf16.msra.mxu0 0
    %1743 = vmatprep.mubr.bf16.mxu0 0
    %1744 = vmatmul.mubr.bf16.gmra.mrb[0].mxu0 %v1706
    %v1745 = vpop.f32.mrb[0].mxu0
    %v1746 = vadd.f32 0.0, %v1745
    %v1747 = vpop.f32.mrb[0].mxu0
    %v1748 = vpop.f32.mrb[0].mxu0
    %v1749 = vadd.f32 0.0, %v1748
    %v1750 = vpop.f32.mrb[0].mxu0
    %1751 = vmatprep.mubr.bf16.mxu0 0
    %1752 = vmatmul.mubr.bf16.gmra.mrb[0].mxu0 %v1709
    %v1753 = vpop.f32.mrb[0].mxu0
    %v1754 = vadd.f32 0.0, %v1753
    %v1755 = vpop.f32.mrb[0].mxu0
    %v1756 = vpop.f32.mrb[0].mxu0
    %v1757 = vadd.f32 0.0, %v1756
    %v1758 = vpop.f32.mrb[0].mxu0
    %1759 = vdwg.mxu0
    %1760 = vxpose.xlu0.b32.start [1/16] %v1581, 128
    %1761 = vxpose.xlu0.b32.cont [2/16] %v1584, 128
    %1762 = vxpose.xlu0.b32.cont [3/16] %v1589, 128
    %1763 = vxpose.xlu0.b32.cont [4/16] %v1592, 128
    %1764 = vxpose.xlu0.b32.cont [5/16] 0.0, 128
    %1765 = vxpose.xlu0.b32.cont [6/16] 0.0, 128
    %1766 = vxpose.xlu0.b32.cont [7/16] 0.0, 128
    %1767 = vxpose.xlu0.b32.cont [8/16] 0.0, 128
    %1768 = vxpose.xlu0.b32.cont [9/16] 0.0, 128
    %1769 = vxpose.xlu0.b32.cont [10/16] 0.0, 128
    %1770 = vxpose.xlu0.b32.cont [11/16] 0.0, 128
    %1771 = vxpose.xlu0.b32.cont [12/16] 0.0, 128
    %1772 = vxpose.xlu0.b32.cont [13/16] 0.0, 128
    %1773 = vxpose.xlu0.b32.cont [14/16] 0.0, 128
    %1774 = vxpose.xlu0.b32.cont [15/16] 0.0, 128
    %1775 = vxpose.xlu0.b32.end [16/16] 0.0, 128
    %v1776 = vpop.trf.xlu0
    %v1777 = vpop.trf.xlu0
    %v1778 = vpop.trf.xlu0
    %v1779 = vpop.trf.xlu0
    %v1780 = vpop.trf.xlu0
    %v1781 = vpop.trf.xlu0
    %v1782 = vpop.trf.xlu0
    %v1783 = vpop.trf.xlu0
    %v1784 = vpop.trf.xlu0
    %v1785 = vpop.trf.xlu0
    %v1786 = vpop.trf.xlu0
    %v1787 = vpop.trf.xlu0
    %v1788 = vpop.trf.xlu0
    %v1789 = vpop.trf.xlu0
    %v1790 = vpop.trf.xlu0
    %v1791 = vpop.trf.xlu0
    %1792 = vxpose.xlu0.b32.start [1/16] %v1636, 128
    %1793 = vxpose.xlu0.b32.cont [2/16] %v1639, 128
    %1794 = vxpose.xlu0.b32.cont [3/16] %v1644, 128
    %1795 = vxpose.xlu0.b32.cont [4/16] %v1647, 128
    %1796 = vxpose.xlu0.b32.cont [5/16] 0.0, 128
    %1797 = vxpose.xlu0.b32.cont [6/16] 0.0, 128
    %1798 = vxpose.xlu0.b32.cont [7/16] 0.0, 128
    %1799 = vxpose.xlu0.b32.cont [8/16] 0.0, 128
    %1800 = vxpose.xlu0.b32.cont [9/16] 0.0, 128
    %1801 = vxpose.xlu0.b32.cont [10/16] 0.0, 128
    %1802 = vxpose.xlu0.b32.cont [11/16] 0.0, 128
    %1803 = vxpose.xlu0.b32.cont [12/16] 0.0, 128
    %1804 = vxpose.xlu0.b32.cont [13/16] 0.0, 128
    %1805 = vxpose.xlu0.b32.cont [14/16] 0.0, 128
    %1806 = vxpose.xlu0.b32.cont [15/16] 0.0, 128
    %1807 = vxpose.xlu0.b32.end [16/16] 0.0, 128
    %v1808 = vpop.trf.xlu0
    %v1809 = vpop.trf.xlu0
    %v1810 = vpop.trf.xlu0
    %v1811 = vpop.trf.xlu0
    %v1812 = vpop.trf.xlu0
    %v1813 = vpop.trf.xlu0
    %v1814 = vpop.trf.xlu0
    %v1815 = vpop.trf.xlu0
    %v1816 = vpop.trf.xlu0
    %v1817 = vpop.trf.xlu0
    %v1818 = vpop.trf.xlu0
    %v1819 = vpop.trf.xlu0
    %v1820 = vpop.trf.xlu0
    %v1821 = vpop.trf.xlu0
    %v1822 = vpop.trf.xlu0
    %v1823 = vpop.trf.xlu0
    %1824 = vxpose.xlu0.b32.start [1/16] %v1691, 128
    %1825 = vxpose.xlu0.b32.cont [2/16] %v1694, 128
    %1826 = vxpose.xlu0.b32.cont [3/16] %v1699, 128
    %1827 = vxpose.xlu0.b32.cont [4/16] %v1702, 128
    %1828 = vxpose.xlu0.b32.cont [5/16] 0.0, 128
    %1829 = vxpose.xlu0.b32.cont [6/16] 0.0, 128
    %1830 = vxpose.xlu0.b32.cont [7/16] 0.0, 128
    %1831 = vxpose.xlu0.b32.cont [8/16] 0.0, 128
    %1832 = vxpose.xlu0.b32.cont [9/16] 0.0, 128
    %1833 = vxpose.xlu0.b32.cont [10/16] 0.0, 128
    %1834 = vxpose.xlu0.b32.cont [11/16] 0.0, 128
    %1835 = vxpose.xlu0.b32.cont [12/16] 0.0, 128
    %1836 = vxpose.xlu0.b32.cont [13/16] 0.0, 128
    %1837 = vxpose.xlu0.b32.cont [14/16] 0.0, 128
    %1838 = vxpose.xlu0.b32.cont [15/16] 0.0, 128
    %1839 = vxpose.xlu0.b32.end [16/16] 0.0, 128
    %v1840 = vpop.trf.xlu0
    %v1841 = vpop.trf.xlu0
    %v1842 = vpop.trf.xlu0
    %v1843 = vpop.trf.xlu0
    %v1844 = vpop.trf.xlu0
    %v1845 = vpop.trf.xlu0
    %v1846 = vpop.trf.xlu0
    %v1847 = vpop.trf.xlu0
    %v1848 = vpop.trf.xlu0
    %v1849 = vpop.trf.xlu0
    %v1850 = vpop.trf.xlu0
    %v1851 = vpop.trf.xlu0
    %v1852 = vpop.trf.xlu0
    %v1853 = vpop.trf.xlu0
    %v1854 = vpop.trf.xlu0
    %v1855 = vpop.trf.xlu0
    %1856 = vxpose.xlu0.b32.start [1/16] %v1746, 128
    %1857 = vxpose.xlu0.b32.cont [2/16] %v1749, 128
    %1858 = vxpose.xlu0.b32.cont [3/16] %v1754, 128
    %1859 = vxpose.xlu0.b32.cont [4/16] %v1757, 128
    %1860 = vxpose.xlu0.b32.cont [5/16] 0.0, 128
    %1861 = vxpose.xlu0.b32.cont [6/16] 0.0, 128
    %1862 = vxpose.xlu0.b32.cont [7/16] 0.0, 128
    %1863 = vxpose.xlu0.b32.cont [8/16] 0.0, 128
    %1864 = vxpose.xlu0.b32.cont [9/16] 0.0, 128
    %1865 = vxpose.xlu0.b32.cont [10/16] 0.0, 128
    %1866 = vxpose.xlu0.b32.cont [11/16] 0.0, 128
    %1867 = vxpose.xlu0.b32.cont [12/16] 0.0, 128
    %1868 = vxpose.xlu0.b32.cont [13/16] 0.0, 128
    %1869 = vxpose.xlu0.b32.cont [14/16] 0.0, 128
    %1870 = vxpose.xlu0.b32.cont [15/16] 0.0, 128
    %1871 = vxpose.xlu0.b32.end [16/16] 0.0, 128
    %v1872 = vpop.trf.xlu0
    %v1873 = vpop.trf.xlu0
    %v1874 = vpop.trf.xlu0
    %v1875 = vpop.trf.xlu0
    %v1876 = vpop.trf.xlu0
    %v1877 = vpop.trf.xlu0
    %v1878 = vpop.trf.xlu0
    %v1879 = vpop.trf.xlu0
    %v1880 = vpop.trf.xlu0
    %v1881 = vpop.trf.xlu0
    %v1882 = vpop.trf.xlu0
    %v1883 = vpop.trf.xlu0
    %v1884 = vpop.trf.xlu0
    %v1885 = vpop.trf.xlu0
    %v1886 = vpop.trf.xlu0
    %v1887 = vpop.trf.xlu0
    %1888 = vxpose.xlu0.b32.start [1/16] %v1776, 128
    %1889 = vxpose.xlu0.b32.cont [2/16] %v1777, 128
    %1890 = vxpose.xlu0.b32.cont [3/16] %v1778, 128
    %1891 = vxpose.xlu0.b32.cont [4/16] %v1779, 128
    %1892 = vxpose.xlu0.b32.cont [5/16] %v1808, 128
    %1893 = vxpose.xlu0.b32.cont [6/16] %v1809, 128
    %1894 = vxpose.xlu0.b32.cont [7/16] %v1810, 128
    %1895 = vxpose.xlu0.b32.cont [8/16] %v1811, 128
    %1896 = vxpose.xlu0.b32.cont [9/16] %v1840, 128
    %1897 = vxpose.xlu0.b32.cont [10/16] %v1841, 128
    %1898 = vxpose.xlu0.b32.cont [11/16] %v1842, 128
    %1899 = vxpose.xlu0.b32.cont [12/16] %v1843, 128
    %1900 = vxpose.xlu0.b32.cont [13/16] %v1872, 128
    %1901 = vxpose.xlu0.b32.cont [14/16] %v1873, 128
    %1902 = vxpose.xlu0.b32.cont [15/16] %v1874, 128
    %1903 = vxpose.xlu0.b32.end [16/16] %v1875, 128
    %v1904 = vpop.trf.xlu0
    %v1905 = vpop.trf.xlu0
    %v1906 = vpop.trf.xlu0
    %v1907 = vpop.trf.xlu0
    %v1908 = vpop.trf.xlu0
    %v1909 = vpop.trf.xlu0
    %v1910 = vpop.trf.xlu0
    %v1911 = vpop.trf.xlu0
    %v1912 = vpop.trf.xlu0
    %v1913 = vpop.trf.xlu0
    %v1914 = vpop.trf.xlu0
    %v1915 = vpop.trf.xlu0
    %v1916 = vpop.trf.xlu0
    %v1917 = vpop.trf.xlu0
    %v1918 = vpop.trf.xlu0
    %v1919 = vpop.trf.xlu0
    %v1920 = vpack.c.bf16 %v1905, %v1904
    %v1921 = vpack.c.bf16 %v1907, %v1906
    %v1922 = vld [vmem:[#allocation17] sm:$0xf]
    %v1923 = vld [vmem:[#allocation17 + $0x4] sm:$0xf]
    %v1924 = vld [vmem:[#allocation17 + $0x8] sm:$0xf]
    %v1925 = vld [vmem:[#allocation17 + $0xc] sm:$0xf]
    %v1926 = vld [vmem:[#allocation17 + $0x10] sm:$0xf]
    %v1927 = vld [vmem:[#allocation17 + $0x14] sm:$0xf]
    %v1928 = vld [vmem:[#allocation17 + $0x18] sm:$0xf]
    %v1929 = vld [vmem:[#allocation17 + $0x1c] sm:$0xf]
    %v1930 = vld [vmem:[#allocation17 + $0x20] sm:$0xf]
    %v1931 = vld [vmem:[#allocation17 + $0x24] sm:$0xf]
    %v1932 = vld [vmem:[#allocation17 + $0x28] sm:$0xf]
    %v1933 = vld [vmem:[#allocation17 + $0x2c] sm:$0xf]
    %v1934 = vld [vmem:[#allocation17 + $0x30] sm:$0xf]
    %v1935 = vld [vmem:[#allocation17 + $0x34] sm:$0xf]
    %v1936 = vld [vmem:[#allocation17 + $0x38] sm:$0xf]
    %v1937 = vld [vmem:[#allocation17 + $0x3c] sm:$0xf]
    %v1954 = vunpack.c.l.b16 %v1922
    %v1955 = vunpack.c.l.b16 %v1923
    %v1956 = vunpack.c.l.b16 %v1924
    %v1957 = vunpack.c.l.b16 %v1925
    %v1958 = vunpack.c.l.b16 %v1926
    %v1959 = vunpack.c.l.b16 %v1927
    %v1960 = vunpack.c.l.b16 %v1928
    %v1961 = vunpack.c.l.b16 %v1929
    %v1962 = vunpack.c.l.b16 %v1930
    %v1963 = vunpack.c.l.b16 %v1931
    %v1964 = vunpack.c.l.b16 %v1932
    %v1965 = vunpack.c.l.b16 %v1933
    %v1966 = vunpack.c.l.b16 %v1934
    %v1967 = vunpack.c.l.b16 %v1935
    %v1968 = vunpack.c.l.b16 %v1936
    %v1969 = vunpack.c.l.b16 %v1937
    %v1970 = vpack.c.b16 %v1955, %v1954
    %v1971 = vpack.c.b16 %v1957, %v1956
    %v1972 = vpack.c.b16 %v1959, %v1958
    %v1973 = vpack.c.b16 %v1961, %v1960
    %v1974 = vpack.c.b16 %v1963, %v1962
    %v1975 = vpack.c.b16 %v1965, %v1964
    %v1976 = vpack.c.b16 %v1967, %v1966
    %v1977 = vpack.c.b16 %v1969, %v1968
    %1986 = vmatprep.subr.bf16.mxu0 0
    %1987 = vmatpush1.bf16.msra.mxu0 %v1970
    %1988 = vmatprep.subr.bf16.mxu0 0
    %1989 = vmatpush1.bf16.msra.mxu0 %v1971
    %1990 = vmatprep.subr.bf16.mxu0 0
    %1991 = vmatpush1.bf16.msra.mxu0 %v1972
    %1992 = vmatprep.subr.bf16.mxu0 0
    %1993 = vmatpush1.bf16.msra.mxu0 %v1973
    %1994 = vmatprep.subr.bf16.mxu0 0
    %1995 = vmatpush1.bf16.msra.mxu0 %v1974
    %1996 = vmatprep.subr.bf16.mxu0 0
    %1997 = vmatpush1.bf16.msra.mxu0 %v1975
    %1998 = vmatprep.subr.bf16.mxu0 0
    %1999 = vmatpush1.bf16.msra.mxu0 %v1976
    %2000 = vmatprep.subr.bf16.mxu0 0
    %2001 = vmatpush1.bf16.msra.mxu0 %v1977
    %2002 = vmatprep.subr.bf16.mxu0 0
    %2003 = vmatpush1.bf16.msra.mxu0 0
    %2004 = vmatprep.subr.bf16.mxu0 0
    %2005 = vmatpush1.bf16.msra.mxu0 0
    %2006 = vmatprep.subr.bf16.mxu0 0
    %2007 = vmatpush1.bf16.msra.mxu0 0
    %2008 = vmatprep.subr.bf16.mxu0 0
    %2009 = vmatpush1.bf16.msra.mxu0 0
    %2010 = vmatprep.subr.bf16.mxu0 0
    %2011 = vmatpush1.bf16.msra.mxu0 0
    %2012 = vmatprep.subr.bf16.mxu0 0
    %2013 = vmatpush1.bf16.msra.mxu0 0
    %2014 = vmatprep.subr.bf16.mxu0 0
    %2015 = vmatpush1.bf16.msra.mxu0 0
    %2016 = vmatprep.subr.bf16.mxu0 0
    %2017 = vmatpush1.bf16.msra.mxu0 0
    %2018 = vmatprep.mubr.bf16.mxu0 0
    %2019 = vmatmul.mubr.bf16.gmra.mrb[0].mxu0 %v1920
    %v2020 = vpop.f32.mrb[0].mxu0
    %v2021 = vadd.f32 0.0, %v2020
    %v2022 = vpop.f32.mrb[0].mxu0
    %v2023 = vpop.f32.mrb[0].mxu0
    %v2024 = vadd.f32 0.0, %v2023
    %v2025 = vpop.f32.mrb[0].mxu0
    %2026 = vmatprep.mubr.bf16.mxu0 0
    %2027 = vmatmul.mubr.bf16.gmra.mrb[0].mxu0 %v1921
    %v2028 = vpop.f32.mrb[0].mxu0
    %v2029 = vadd.f32 0.0, %v2028
    %v2030 = vpop.f32.mrb[0].mxu0
    %v2031 = vpop.f32.mrb[0].mxu0
    %v2032 = vadd.f32 0.0, %v2031
    %v2033 = vpop.f32.mrb[0].mxu0
    %2034 = vdwg.mxu0
    %v2035 = vadd.f32 %v217, %v2021
    %v2036 = vadd.f32 %v218, %v2024
    %v2037 = vadd.f32 %v219, %v2029
    %v2038 = vadd.f32 %v220, %v2032
    %v2039 = vmul.f32 %v2035, %v2035
    %v2040 = vmul.f32 %v2036, %v2036
    %v2041 = vmul.f32 %v2037, %v2037
    %v2042 = vmul.f32 %v2038, %v2038
    %2043 = vadd.xlane.f32.xlu0 %v2039
    %v2044 = vpop.xlane.xlu0 %2043
    %2045 = vadd.xlane.f32.xlu0 %v2040
    %v2046 = vpop.xlane.xlu0 %2045
    %2047 = vadd.xlane.f32.xlu0 %v2041
    %v2048 = vpop.xlane.xlu0 %2047
    %2049 = vadd.xlane.f32.xlu0 %v2042
    %v2050 = vpop.xlane.xlu0 %2049
    %v2051 = vmul.f32 %v2044, %v233
    %v2052 = vmul.f32 %v2046, %v233
    %v2053 = vmul.f32 %v2048, %v233
    %v2054 = vmul.f32 %v2050, %v233
    %v2055 = vadd.f32 %v2051, 1e-06
    %v2056 = vadd.f32 %v2052, 1e-06
    %v2057 = vadd.f32 %v2053, 1e-06
    %v2058 = vadd.f32 %v2054, 1e-06
    %v2059 = vrsqrt.pop %v2055
    %v2060 = vrsqrt.pop %v2056
    %v2061 = vrsqrt.pop %v2057
    %v2062 = vrsqrt.pop %v2058
    %v2063 = vmul.f32 %v2035, %v2059
    %v2064 = vmul.f32 %v2036, %v2060
    %v2065 = vmul.f32 %v2037, %v2061
    %v2066 = vmul.f32 %v2038, %v2062
    %v2067 = vld [vmem:[%s8] sm:$0x1]
    %v2069 = vlaneseq
    %v2070 = vshrl.u32 %v2069, 7
    %v2071 = vsub.s32 0, %v2070
    %v2072 = vrot.slane %v2067, %v2071
    %v2074 = vmul.f32 %v2063, %v2072
    %v2075 = vmul.f32 %v2064, %v2072
    %v2076 = vmul.f32 %v2065, %v2072
    %v2077 = vmul.f32 %v2066, %v2072
    %v2078 = vpack.c.bf16 %v2075, %v2074
    %v2079 = vpack.c.bf16 %v2077, %v2076
    %s2080 = smul.u32 4, 16
    %s2081 = smul.u32 %s2080, 4
    %s2082 = sshll.u32 %s2081, 4
    %2083 = dma.done [#allocation5], %s2082
    %v2084 = vld [vmem:[#allocation2] sm:$0xff]
    %v2085 = vld [vmem:[#allocation2 + $0x8] sm:$0xff]
    %v2086 = vld [vmem:[#allocation2 + $0x10] sm:$0xff]
    %v2087 = vld [vmem:[#allocation2 + $0x18] sm:$0xff]
    %v2088 = vld [vmem:[#allocation2 + $0x20] sm:$0xff]
    %v2089 = vld [vmem:[#allocation2 + $0x28] sm:$0xff]
    %v2090 = vld [vmem:[#allocation2 + $0x30] sm:$0xff]
    %v2091 = vld [vmem:[#allocation2 + $0x38] sm:$0xff]
    %v2092 = vld [vmem:[#allocation2 + $0x40] sm:$0xff]
    %v2093 = vld [vmem:[#allocation2 + $0x48] sm:$0xff]
    %v2094 = vld [vmem:[#allocation2 + $0x50] sm:$0xff]
    %v2095 = vld [vmem:[#allocation2 + $0x58] sm:$0xff]
    %v2096 = vld [vmem:[#allocation2 + $0x60] sm:$0xff]
    %v2097 = vld [vmem:[#allocation2 + $0x68] sm:$0xff]
    %v2098 = vld [vmem:[#allocation2 + $0x70] sm:$0xff]
    %v2099 = vld [vmem:[#allocation2 + $0x78] sm:$0xff]
    %v2100 = vld [vmem:[#allocation2 + $0x80] sm:$0xff]
    %v2101 = vld [vmem:[#allocation2 + $0x88] sm:$0xff]
    %v2102 = vld [vmem:[#allocation2 + $0x90] sm:$0xff]
    %v2103 = vld [vmem:[#allocation2 + $0x98] sm:$0xff]
    %v2104 = vld [vmem:[#allocation2 + $0xa0] sm:$0xff]
    %v2105 = vld [vmem:[#allocation2 + $0xa8] sm:$0xff]
    %v2106 = vld [vmem:[#allocation2 + $0xb0] sm:$0xff]
    %v2107 = vld [vmem:[#allocation2 + $0xb8] sm:$0xff]
    %v2108 = vld [vmem:[#allocation2 + $0xc0] sm:$0xff]
    %v2109 = vld [vmem:[#allocation2 + $0xc8] sm:$0xff]
    %v2110 = vld [vmem:[#allocation2 + $0xd0] sm:$0xff]
    %v2111 = vld [vmem:[#allocation2 + $0xd8] sm:$0xff]
    %v2112 = vld [vmem:[#allocation2 + $0xe0] sm:$0xff]
    %v2113 = vld [vmem:[#allocation2 + $0xe8] sm:$0xff]
    %v2114 = vld [vmem:[#allocation2 + $0xf0] sm:$0xff]
    %v2115 = vld [vmem:[#allocation2 + $0xf8] sm:$0xff]
    %2116 = vmatprep.subr.bf16.mxu0 %v2085
    %2117 = vmatpush1.bf16.msra.mxu0 %v2084
    %2118 = vmatprep.subr.bf16.mxu0 %v2089
    %2119 = vmatpush1.bf16.msra.mxu0 %v2088
    %2120 = vmatprep.subr.bf16.mxu0 %v2093
    %2121 = vmatpush1.bf16.msra.mxu0 %v2092
    %2122 = vmatprep.subr.bf16.mxu0 %v2097
    %2123 = vmatpush1.bf16.msra.mxu0 %v2096
    %2124 = vmatprep.subr.bf16.mxu0 %v2101
    %2125 = vmatpush1.bf16.msra.mxu0 %v2100
    %2126 = vmatprep.subr.bf16.mxu0 %v2105
    %2127 = vmatpush1.bf16.msra.mxu0 %v2104
    %2128 = vmatprep.subr.bf16.mxu0 %v2109
    %2129 = vmatpush1.bf16.msra.mxu0 %v2108
    %2130 = vmatprep.subr.bf16.mxu0 %v2113
    %2131 = vmatpush1.bf16.msra.mxu0 %v2112
    %2132 = vmatprep.subr.bf16.mxu0 0
    %2133 = vmatpush1.bf16.msra.mxu0 0
    %2134 = vmatprep.subr.bf16.mxu0 0
    %2135 = vmatpush1.bf16.msra.mxu0 0
    %2136 = vmatprep.subr.bf16.mxu0 0
    %2137 = vmatpush1.bf16.msra.mxu0 0
    %2138 = vmatprep.subr.bf16.mxu0 0
    %2139 = vmatpush1.bf16.msra.mxu0 0
    %2140 = vmatprep.subr.bf16.mxu0 0
    %2141 = vmatpush1.bf16.msra.mxu0 0
    %2142 = vmatprep.subr.bf16.mxu0 0
    %2143 = vmatpush1.bf16.msra.mxu0 0
    %2144 = vmatprep.subr.bf16.mxu0 0
    %2145 = vmatpush1.bf16.msra.mxu0 0
    %2146 = vmatprep.subr.bf16.mxu0 0
    %2147 = vmatpush1.bf16.msra.mxu0 0
    %2148 = vmatprep.mubr.bf16.mxu0 0
    %2149 = vmatmul.mubr.bf16.gmra.mrb[0].mxu0 %v2078
    %v2150 = vpop.f32.mrb[0].mxu0
    %v2151 = vadd.f32 0.0, %v2150
    %v2152 = vpop.f32.mrb[0].mxu0
    %v2153 = vadd.f32 0.0, %v2152
    %v2154 = vpop.f32.mrb[0].mxu0
    %v2155 = vadd.f32 0.0, %v2154
    %v2156 = vpop.f32.mrb[0].mxu0
    %v2157 = vadd.f32 0.0, %v2156
    %2158 = vmatprep.mubr.bf16.mxu0 0
    %2159 = vmatmul.mubr.bf16.gmra.mrb[0].mxu0 %v2079
    %v2160 = vpop.f32.mrb[0].mxu0
    %v2161 = vadd.f32 0.0, %v2160
    %v2162 = vpop.f32.mrb[0].mxu0
    %v2163 = vadd.f32 0.0, %v2162
    %v2164 = vpop.f32.mrb[0].mxu0
    %v2165 = vadd.f32 0.0, %v2164
    %v2166 = vpop.f32.mrb[0].mxu0
    %v2167 = vadd.f32 0.0, %v2166
    %2168 = vdwg.mxu0
    %2169 = vmatprep.subr.bf16.mxu0 %v2087
    %2170 = vmatpush1.bf16.msra.mxu0 %v2086
    %2171 = vmatprep.subr.bf16.mxu0 %v2091
    %2172 = vmatpush1.bf16.msra.mxu0 %v2090
    %2173 = vmatprep.subr.bf16.mxu0 %v2095
    %2174 = vmatpush1.bf16.msra.mxu0 %v2094
    %2175 = vmatprep.subr.bf16.mxu0 %v2099
    %2176 = vmatpush1.bf16.msra.mxu0 %v2098
    %2177 = vmatprep.subr.bf16.mxu0 %v2103
    %2178 = vmatpush1.bf16.msra.mxu0 %v2102
    %2179 = vmatprep.subr.bf16.mxu0 %v2107
    %2180 = vmatpush1.bf16.msra.mxu0 %v2106
    %2181 = vmatprep.subr.bf16.mxu0 %v2111
    %2182 = vmatpush1.bf16.msra.mxu0 %v2110
    %2183 = vmatprep.subr.bf16.mxu0 %v2115
    %2184 = vmatpush1.bf16.msra.mxu0 %v2114
    %2185 = vmatprep.subr.bf16.mxu0 0
    %2186 = vmatpush1.bf16.msra.mxu0 0
    %2187 = vmatprep.subr.bf16.mxu0 0
    %2188 = vmatpush1.bf16.msra.mxu0 0
    %2189 = vmatprep.subr.bf16.mxu0 0
    %2190 = vmatpush1.bf16.msra.mxu0 0
    %2191 = vmatprep.subr.bf16.mxu0 0
    %2192 = vmatpush1.bf16.msra.mxu0 0
    %2193 = vmatprep.subr.bf16.mxu0 0
    %2194 = vmatpush1.bf16.msra.mxu0 0
    %2195 = vmatprep.subr.bf16.mxu0 0
    %2196 = vmatpush1.bf16.msra.mxu0 0
    %2197 = vmatprep.subr.bf16.mxu0 0
    %2198 = vmatpush1.bf16.msra.mxu0 0
    %2199 = vmatprep.subr.bf16.mxu0 0
    %2200 = vmatpush1.bf16.msra.mxu0 0
    %2201 = vmatprep.mubr.bf16.mxu0 0
    %2202 = vmatmul.mubr.bf16.gmra.mrb[0].mxu0 %v2078
    %v2203 = vpop.f32.mrb[0].mxu0
    %v2204 = vadd.f32 0.0, %v2203
    %v2205 = vpop.f32.mrb[0].mxu0
    %v2206 = vadd.f32 0.0, %v2205
    %v2207 = vpop.f32.mrb[0].mxu0
    %v2208 = vadd.f32 0.0, %v2207
    %v2209 = vpop.f32.mrb[0].mxu0
    %v2210 = vadd.f32 0.0, %v2209
    %2211 = vmatprep.mubr.bf16.mxu0 0
    %2212 = vmatmul.mubr.bf16.gmra.mrb[0].mxu0 %v2079
    %v2213 = vpop.f32.mrb[0].mxu0
    %v2214 = vadd.f32 0.0, %v2213
    %v2215 = vpop.f32.mrb[0].mxu0
    %v2216 = vadd.f32 0.0, %v2215
    %v2217 = vpop.f32.mrb[0].mxu0
    %v2218 = vadd.f32 0.0, %v2217
    %v2219 = vpop.f32.mrb[0].mxu0
    %v2220 = vadd.f32 0.0, %v2219
    %2221 = vdwg.mxu0
    %v2222 = vxor.u32 %v2151, 2147483648
    %v2223 = vxor.u32 %v2153, 2147483648
    %v2224 = vxor.u32 %v2155, 2147483648
    %v2225 = vxor.u32 %v2157, 2147483648
    %v2226 = vxor.u32 %v2161, 2147483648
    %v2227 = vxor.u32 %v2163, 2147483648
    %v2228 = vxor.u32 %v2165, 2147483648
    %v2229 = vxor.u32 %v2167, 2147483648
    %v2230 = vmul.f32 %v2222, 1.442695
    %v2231 = vpow.pop %v2230
    %v2232 = vmul.f32 %v2223, 1.442695
    %v2233 = vpow.pop %v2232
    %v2234 = vmul.f32 %v2224, 1.442695
    %v2235 = vpow.pop %v2234
    %v2236 = vmul.f32 %v2225, 1.442695
    %v2237 = vpow.pop %v2236
    %v2238 = vmul.f32 %v2226, 1.442695
    %v2239 = vpow.pop %v2238
    %v2240 = vmul.f32 %v2227, 1.442695
    %v2241 = vpow.pop %v2240
    %v2242 = vmul.f32 %v2228, 1.442695
    %v2243 = vpow.pop %v2242
    %v2244 = vmul.f32 %v2229, 1.442695
    %v2245 = vpow.pop %v2244
    %v2246 = vadd.f32 %v2231, 1.0
    %v2247 = vadd.f32 %v2233, 1.0
    %v2248 = vadd.f32 %v2235, 1.0
    %v2249 = vadd.f32 %v2237, 1.0
    %v2250 = vadd.f32 %v2239, 1.0
    %v2251 = vadd.f32 %v2241, 1.0
    %v2252 = vadd.f32 %v2243, 1.0
    %v2253 = vadd.f32 %v2245, 1.0
    %v2254 = vrcp.pop %v2246
    %v2255 = vmul.f32 1.0, %v2254
    %v2256 = vrcp.pop %v2247
    %v2257 = vmul.f32 1.0, %v2256
    %v2258 = vrcp.pop %v2248
    %v2259 = vmul.f32 1.0, %v2258
    %v2260 = vrcp.pop %v2249
    %v2261 = vmul.f32 1.0, %v2260
    %v2262 = vrcp.pop %v2250
    %v2263 = vmul.f32 1.0, %v2262
    %v2264 = vrcp.pop %v2251
    %v2265 = vmul.f32 1.0, %v2264
    %v2266 = vrcp.pop %v2252
    %v2267 = vmul.f32 1.0, %v2266
    %v2268 = vrcp.pop %v2253
    %v2269 = vmul.f32 1.0, %v2268
    %v2270 = vmul.f32 %v2151, %v2255
    %v2271 = vmul.f32 %v2153, %v2257
    %v2272 = vmul.f32 %v2155, %v2259
    %v2273 = vmul.f32 %v2157, %v2261
    %v2274 = vmul.f32 %v2161, %v2263
    %v2275 = vmul.f32 %v2163, %v2265
    %v2276 = vmul.f32 %v2165, %v2267
    %v2277 = vmul.f32 %v2167, %v2269
    %v2278 = vmul.f32 %v2270, %v2204
    %v2279 = vmul.f32 %v2271, %v2206
    %v2280 = vmul.f32 %v2272, %v2208
    %v2281 = vmul.f32 %v2273, %v2210
    %v2282 = vmul.f32 %v2274, %v2214
    %v2283 = vmul.f32 %v2275, %v2216
    %v2284 = vmul.f32 %v2276, %v2218
    %v2285 = vmul.f32 %v2277, %v2220
    %v2286 = vpack.c.bf16 %v2280, %v2278
    %v2287 = vpack.c.bf16 %v2281, %v2279
    %v2288 = vpack.c.bf16 %v2284, %v2282
    %v2289 = vpack.c.bf16 %v2285, %v2283
    %s2290 = smul.u32 4, 32
    %s2291 = smul.u32 %s2290, 1
    %s2292 = sshll.u32 %s2291, 4
    %2293 = dma.done %s170, %s2292
    %v2294 = vld [vmem:[#allocation3] sm:$0xff]
    %v2295 = vld [vmem:[#allocation3 + $0x8] sm:$0xff]
    %v2296 = vld [vmem:[#allocation3 + $0x10] sm:$0xff]
    %v2297 = vld [vmem:[#allocation3 + $0x18] sm:$0xff]
    %v2298 = vld [vmem:[#allocation3 + $0x20] sm:$0xff]
    %v2299 = vld [vmem:[#allocation3 + $0x28] sm:$0xff]
    %v2300 = vld [vmem:[#allocation3 + $0x30] sm:$0xff]
    %v2301 = vld [vmem:[#allocation3 + $0x38] sm:$0xff]
    %v2302 = vld [vmem:[#allocation3 + $0x40] sm:$0xff]
    %v2303 = vld [vmem:[#allocation3 + $0x48] sm:$0xff]
    %v2304 = vld [vmem:[#allocation3 + $0x50] sm:$0xff]
    %v2305 = vld [vmem:[#allocation3 + $0x58] sm:$0xff]
    %v2306 = vld [vmem:[#allocation3 + $0x60] sm:$0xff]
    %v2307 = vld [vmem:[#allocation3 + $0x68] sm:$0xff]
    %v2308 = vld [vmem:[#allocation3 + $0x70] sm:$0xff]
    %v2309 = vld [vmem:[#allocation3 + $0x78] sm:$0xff]
    %2310 = vmatprep.subr.bf16.mxu0 0
    %2311 = vmatpush1.bf16.msra.mxu0 %v2294
    %2312 = vmatprep.subr.bf16.mxu0 0
    %2313 = vmatpush1.bf16.msra.mxu0 %v2295
    %2314 = vmatprep.subr.bf16.mxu0 0
    %2315 = vmatpush1.bf16.msra.mxu0 %v2296
    %2316 = vmatprep.subr.bf16.mxu0 0
    %2317 = vmatpush1.bf16.msra.mxu0 %v2297
    %2318 = vmatprep.subr.bf16.mxu0 0
    %2319 = vmatpush1.bf16.msra.mxu0 %v2298
    %2320 = vmatprep.subr.bf16.mxu0 0
    %2321 = vmatpush1.bf16.msra.mxu0 %v2299
    %2322 = vmatprep.subr.bf16.mxu0 0
    %2323 = vmatpush1.bf16.msra.mxu0 %v2300
    %2324 = vmatprep.subr.bf16.mxu0 0
    %2325 = vmatpush1.bf16.msra.mxu0 %v2301
    %2326 = vmatprep.subr.bf16.mxu0 0
    %2327 = vmatpush1.bf16.msra.mxu0 %v2302
    %2328 = vmatprep.subr.bf16.mxu0 0
    %2329 = vmatpush1.bf16.msra.mxu0 %v2303
    %2330 = vmatprep.subr.bf16.mxu0 0
    %2331 = vmatpush1.bf16.msra.mxu0 %v2304
    %2332 = vmatprep.subr.bf16.mxu0 0
    %2333 = vmatpush1.bf16.msra.mxu0 %v2305
    %2334 = vmatprep.subr.bf16.mxu0 0
    %2335 = vmatpush1.bf16.msra.mxu0 %v2306
    %2336 = vmatprep.subr.bf16.mxu0 0
    %2337 = vmatpush1.bf16.msra.mxu0 %v2307
    %2338 = vmatprep.subr.bf16.mxu0 0
    %2339 = vmatpush1.bf16.msra.mxu0 %v2308
    %2340 = vmatprep.subr.bf16.mxu0 0
    %2341 = vmatpush1.bf16.msra.mxu0 %v2309
    %2342 = vmatprep.mubr.bf16.mxu0 %v2287
    %2343 = vmatmul.mubr.bf16.gmra.mrb[0].mxu0 %v2286
    %v2344 = vpop.f32.mrb[0].mxu0
    %v2345 = vadd.f32 0.0, %v2344
    %v2346 = vpop.f32.mrb[0].mxu0
    %v2347 = vpop.f32.mrb[0].mxu0
    %v2348 = vadd.f32 0.0, %v2347
    %v2349 = vpop.f32.mrb[0].mxu0
    %2350 = vmatprep.mubr.bf16.mxu0 %v2289
    %2351 = vmatmul.mubr.bf16.gmra.mrb[0].mxu0 %v2288
    %v2352 = vpop.f32.mrb[0].mxu0
    %v2353 = vadd.f32 0.0, %v2352
    %v2354 = vpop.f32.mrb[0].mxu0
    %v2355 = vpop.f32.mrb[0].mxu0
    %v2356 = vadd.f32 0.0, %v2355
    %v2357 = vpop.f32.mrb[0].mxu0
    %2358 = vdwg.mxu0
    %v2359 = vadd.f32 %v2035, %v2345
    %v2360 = vadd.f32 %v2036, %v2348
    %v2361 = vadd.f32 %v2037, %v2353
    %v2362 = vadd.f32 %v2038, %v2356
    %v2363 = vmul.f32 %v2359, %v2359
    %v2364 = vmul.f32 %v2360, %v2360
    %v2365 = vmul.f32 %v2361, %v2361
    %v2366 = vmul.f32 %v2362, %v2362
    %2367 = vadd.xlane.f32.xlu0 %v2363
    %v2368 = vpop.xlane.xlu0 %2367
    %2369 = vadd.xlane.f32.xlu0 %v2364
    %v2370 = vpop.xlane.xlu0 %2369
    %2371 = vadd.xlane.f32.xlu0 %v2365
    %v2372 = vpop.xlane.xlu0 %2371
    %2373 = vadd.xlane.f32.xlu0 %v2366
    %v2374 = vpop.xlane.xlu0 %2373
    %v2375 = vmul.f32 %v2368, %v233
    %v2376 = vmul.f32 %v2370, %v233
    %v2377 = vmul.f32 %v2372, %v233
    %v2378 = vmul.f32 %v2374, %v233
    %v2379 = vadd.f32 %v2375, 1e-06
    %v2380 = vadd.f32 %v2376, 1e-06
    %v2381 = vadd.f32 %v2377, 1e-06
    %v2382 = vadd.f32 %v2378, 1e-06
    %v2383 = vrsqrt.pop %v2379
    %v2384 = vrsqrt.pop %v2380
    %v2385 = vrsqrt.pop %v2381
    %v2386 = vrsqrt.pop %v2382
    %v2387 = vmul.f32 %v2359, %v2383
    %v2388 = vmul.f32 %v2360, %v2384
    %v2389 = vmul.f32 %v2361, %v2385
    %v2390 = vmul.f32 %v2362, %v2386
    %v2391 = vld [vmem:[%s9] sm:$0x1]
    %v2393 = vlaneseq
    %v2394 = vshrl.u32 %v2393, 7
    %v2395 = vsub.s32 0, %v2394
    %v2396 = vrot.slane %v2391, %v2395
    %v2398 = vmul.f32 %v2387, %v2396
    %v2399 = vmul.f32 %v2388, %v2396
    %v2400 = vmul.f32 %v2389, %v2396
    %v2401 = vmul.f32 %v2390, %v2396
    %v2402 = vpack.c.bf16 %v2399, %v2398
    %v2403 = vpack.c.bf16 %v2401, %v2400
    %s2404 = smul.u32 %s2080, 2
    %s2405 = sshll.u32 %s2404, 4
    %2406 = dma.done %s182, %s2405
    %v2407 = vld [vmem:[#allocation4] sm:$0xff]
    %v2408 = vld [vmem:[#allocation4 + $0x8] sm:$0xff]
    %v2409 = vld [vmem:[#allocation4 + $0x10] sm:$0xff]
    %v2410 = vld [vmem:[#allocation4 + $0x18] sm:$0xff]
    %v2411 = vld [vmem:[#allocation4 + $0x20] sm:$0xff]
    %v2412 = vld [vmem:[#allocation4 + $0x28] sm:$0xff]
    %v2413 = vld [vmem:[#allocation4 + $0x30] sm:$0xff]
    %v2414 = vld [vmem:[#allocation4 + $0x38] sm:$0xff]
    %v2415 = vld [vmem:[#allocation4 + $0x40] sm:$0xff]
    %v2416 = vld [vmem:[#allocation4 + $0x48] sm:$0xff]
    %v2417 = vld [vmem:[#allocation4 + $0x50] sm:$0xff]
    %v2418 = vld [vmem:[#allocation4 + $0x58] sm:$0xff]
    %v2419 = vld [vmem:[#allocation4 + $0x60] sm:$0xff]
    %v2420 = vld [vmem:[#allocation4 + $0x68] sm:$0xff]
    %v2421 = vld [vmem:[#allocation4 + $0x70] sm:$0xff]
    %v2422 = vld [vmem:[#allocation4 + $0x78] sm:$0xff]
    %2423 = vmatprep.subr.bf16.mxu0 %v2408
    %2424 = vmatpush1.bf16.msra.mxu0 %v2407
    %2425 = vmatprep.subr.bf16.mxu0 %v2410
    %2426 = vmatpush1.bf16.msra.mxu0 %v2409
    %2427 = vmatprep.subr.bf16.mxu0 %v2412
    %2428 = vmatpush1.bf16.msra.mxu0 %v2411
    %2429 = vmatprep.subr.bf16.mxu0 %v2414
    %2430 = vmatpush1.bf16.msra.mxu0 %v2413
    %2431 = vmatprep.subr.bf16.mxu0 %v2416
    %2432 = vmatpush1.bf16.msra.mxu0 %v2415
    %2433 = vmatprep.subr.bf16.mxu0 %v2418
    %2434 = vmatpush1.bf16.msra.mxu0 %v2417
    %2435 = vmatprep.subr.bf16.mxu0 %v2420
    %2436 = vmatpush1.bf16.msra.mxu0 %v2419
    %2437 = vmatprep.subr.bf16.mxu0 %v2422
    %2438 = vmatpush1.bf16.msra.mxu0 %v2421
    %2439 = vmatprep.subr.bf16.mxu0 0
    %2440 = vmatpush1.bf16.msra.mxu0 0
    %2441 = vmatprep.subr.bf16.mxu0 0
    %2442 = vmatpush1.bf16.msra.mxu0 0
    %2443 = vmatprep.subr.bf16.mxu0 0
    %2444 = vmatpush1.bf16.msra.mxu0 0
    %2445 = vmatprep.subr.bf16.mxu0 0
    %2446 = vmatpush1.bf16.msra.mxu0 0
    %2447 = vmatprep.subr.bf16.mxu0 0
    %2448 = vmatpush1.bf16.msra.mxu0 0
    %2449 = vmatprep.subr.bf16.mxu0 0
    %2450 = vmatpush1.bf16.msra.mxu0 0
    %2451 = vmatprep.subr.bf16.mxu0 0
    %2452 = vmatpush1.bf16.msra.mxu0 0
    %2453 = vmatprep.subr.bf16.mxu0 0
    %2454 = vmatpush1.bf16.msra.mxu0 0
    %2455 = vmatprep.mubr.bf16.mxu0 0
    %2456 = vmatmul.mubr.bf16.gmra.mrb[0].mxu0 %v2402
    %v2457 = vpop.f32.mrb[0].mxu0
    %v2458 = vadd.f32 0.0, %v2457
    %v2459 = vpop.f32.mrb[0].mxu0
    %v2460 = vadd.f32 0.0, %v2459
    %v2461 = vpop.f32.mrb[0].mxu0
    %v2462 = vadd.f32 0.0, %v2461
    %v2463 = vpop.f32.mrb[0].mxu0
    %v2464 = vadd.f32 0.0, %v2463
    %2465 = vmatprep.mubr.bf16.mxu0 0
    %2466 = vmatmul.mubr.bf16.gmra.mrb[0].mxu0 %v2403
    %v2467 = vpop.f32.mrb[0].mxu0
    %v2468 = vadd.f32 0.0, %v2467
    %v2469 = vpop.f32.mrb[0].mxu0
    %v2470 = vadd.f32 0.0, %v2469
    %v2471 = vpop.f32.mrb[0].mxu0
    %v2472 = vadd.f32 0.0, %v2471
    %v2473 = vpop.f32.mrb[0].mxu0
    %v2474 = vadd.f32 0.0, %v2473
    %2475 = vdwg.mxu0
    %2476 = vst [vmem:[#allocation18] sm:$0xff] %v2458
    %2477 = vst [vmem:[#allocation18 + $0x8] sm:$0xff] %v2460
    %2478 = vst [vmem:[#allocation18 + $0x10] sm:$0xff] %v2462
    %2479 = vst [vmem:[#allocation18 + $0x18] sm:$0xff] %v2464
    %2480 = vst [vmem:[#allocation18 + $0x20] sm:$0xff] %v2468
    %2481 = vst [vmem:[#allocation18 + $0x28] sm:$0xff] %v2470
    %2482 = vst [vmem:[#allocation18 + $0x30] sm:$0xff] %v2472
    %2483 = vst [vmem:[#allocation18 + $0x38] sm:$0xff] %v2474
    // Predicated region
    $region74: #{tpu_custom_call.1} parent=1 // pred_check
      _
    $region75: #{tpu_custom_call.1} parent=1 // pred_check_branch
      %2485 = sbr.rel (0) target = $region77
    $region76: #{tpu_custom_call.1} parent=1 // pred_region
      %s2487 = ssub.s32 1024, 1024
      %2488 = vsyncadd [#allocation8], %s2487
      %s2489 = sshll.u32 [#allocation18], 4
      %s2490 = int_to_ptr.vmem [resolvable:$true] %s2489
      %2495 = dma.vmem_to_hbm [thread:$0]  %s2490, 1024, %s13, [#allocation8], 256, 256, 16
    $region77: #{tpu_custom_call.1} parent=1 // pred_fallthru
      _
    // Predicated region
    $region78: #{tpu_custom_call.1} parent=1 // pred_check
      _
    $region79: #{tpu_custom_call.1} parent=1 // pred_check_branch
      %2497 = sbr.rel (0) target = $region81
    $region80: #{tpu_custom_call.1} parent=1 // pred_region
      %2498 = dma.done [#allocation8], 1024
    $region81: #{tpu_custom_call.1} parent=1 // pred_fallthru
      _
    %2499 = vsyncpa [#allocation7], 1
    %2500 = vsyncpa [#allocation10], 1
    %2501 = vsyncpa [#allocation13], 1
    %2502 = vsyncpa [#allocation16], 1
    %2503 = vsyncpa [#allocation8], 1
  %2504 = vsyncmov [#allocation5]
  %s2505 = vpop.sfrf %2504
  %p2506 = scmp.eq.s32.totalorder %s2505, 0
  %p2507 = pneg %p2506
  %2509 = shalt.err (%p2507)
  %s2510 = scalar_lea.sflag [#allocation5], 1
  %2511 = vsyncmov %s2510
  %s2512 = vpop.sfrf %2511
  %p2513 = scmp.eq.s32.totalorder %s2512, 0
  %p2514 = pneg %p2513
  %2516 = shalt.err (%p2514)
  %s2517 = scalar_lea.sflag [#allocation5], 2
  %2518 = vsyncmov %s2517
  %s2519 = vpop.sfrf %2518
  %p2520 = scmp.eq.s32.totalorder %s2519, 0
  %p2521 = pneg %p2520
  %2523 = shalt.err (%p2521)

</llo_original>
